<compile_context>
chip_gen: v7x
topology: tpu7x:2x2x1
jax: 0.10.0
libtpu: 0.0.40
codegen_flags: <defaults>
</compile_context>

<pallas_src>
import numpy as np
import jax
import jax.numpy as jnp
from jax.experimental import pallas as pl
from jax.experimental.pallas import tpu as pltpu


NPAD = 128  # lane-dense padded channel count for all conv outputs / intermediates


# ----------------------------- Pallas kernel -------------------------------

def _conv3x3_bias_relu_kernel(x_ref, w_ref, b_ref, conv_ref, relu_ref):
    """Fused 3x3 'same' conv + bias + ReLU for one (batch, row-tile) grid step.

    x_ref:    (1, H+2, W+2, Cin)   spatially padded input plane (whole image,
                                   re-used across row tiles of the same batch)
    w_ref:    (9, Cin, NPAD)       zero-padded HWIO weights, tap-major
    b_ref:    (1, NPAD)            zero-padded bias
    conv_ref: (1, TILE_H, W, NPAD) pre-ReLU output tile  (lane-dense)
    relu_ref: (1, TILE_H, W, NPAD) post-ReLU output tile (lane-dense)
    """
    t = pl.program_id(1)
    _, tile_h, w_out, npad = conv_ref.shape
    cin = x_ref.shape[3]
    row0 = t * tile_h  # first (unpadded) output row of this tile

    acc = jnp.zeros((tile_h * w_out, npad), jnp.float32)
    # 9-tap accumulation entirely in VMEM / vregs (no HBM im2col).
    for kh in range(3):
        for kw in range(3):
            patch = x_ref[:, pl.ds(row0 + kh, tile_h), pl.ds(kw, w_out), :]
            lhs = patch.reshape(tile_h * w_out, cin)
            acc = acc + jnp.dot(lhs, w_ref[kh * 3 + kw],
                                preferred_element_type=jnp.float32)

    conv = acc + b_ref[...]                                   # bias epilogue (f32)
    conv_ref[...] = conv.reshape(conv_ref.shape).astype(conv_ref.dtype)
    relu_ref[...] = jnp.maximum(conv, 0.0).reshape(relu_ref.shape).astype(relu_ref.dtype)


# ------------------------------ layer wrapper -------------------------------

def conv3x3_bias_relu_fused(x, w, b, *, tile_h=8):
    """Fused 3x3 'same' conv (stride 1) + bias + ReLU.

    x: (B, H, W, Cx) NHWC; Cx may already be NPAD-padded (extra channels == 0).
    w: (3, 3, Cin_real, Cout) HWIO with Cin_real <= Cx.
    Returns (conv_out, relu_out), each (B, H, W, NPAD); channels >= Cout are 0.
    """
    B, H, W, Cx = x.shape
    KH, KW, Cin_real, Cout = w.shape
    assert (KH, KW) == (3, 3) and Cin_real <= Cx and Cout <= NPAD
    if H % tile_h != 0:
        tile_h = H
    Hp, Wp = H + 2, W + 2

    # Zero-padded, lane-dense weight / bias matrices (padded rows/cols are zero,
    # so padded output channels come out exactly zero and padded input channels
    # contribute nothing).
    wmat = jnp.zeros((KH, KW, Cx, NPAD), x.dtype).at[:, :, :Cin_real, :Cout].set(w)
    wmat = wmat.reshape(KH * KW, Cx, NPAD)
    bvec = jnp.zeros((1, NPAD), x.dtype).at[0, :Cout].set(b)

    # Cheap spatial halo pad (NOT a 9x im2col blowup).
    xp = jnp.pad(x, ((0, 0), (1, 1), (1, 1), (0, 0)))

    flops = 2 * B * H * W * (KH * KW * Cx) * NPAD
    bytes_accessed = 4 * (B * Hp * Wp * Cx + KH * KW * Cx * NPAD
                          + NPAD + 2 * B * H * W * NPAD)

    conv_out, relu_out = pl.pallas_call(
        _conv3x3_bias_relu_kernel,
        out_shape=(jax.ShapeDtypeStruct((B, H, W, NPAD), x.dtype),
                   jax.ShapeDtypeStruct((B, H, W, NPAD), x.dtype)),
        grid=(B, H // tile_h),
        in_specs=[
            # Whole padded plane per batch element; block index ignores the row
            # tile axis so it is DMA'd once per batch element.
            pl.BlockSpec((1, Hp, Wp, Cx), lambda bb, t: (bb, 0, 0, 0)),
            pl.BlockSpec((KH * KW, Cx, NPAD), lambda bb, t: (0, 0, 0)),
            pl.BlockSpec((1, NPAD), lambda bb, t: (0, 0)),
        ],
        out_specs=[
            pl.BlockSpec((1, tile_h, W, NPAD), lambda bb, t: (bb, t, 0, 0)),
            pl.BlockSpec((1, tile_h, W, NPAD), lambda bb, t: (bb, t, 0, 0)),
        ],
        compiler_params=pltpu.CompilerParams(
            dimension_semantics=("parallel", "parallel")),
        cost_estimate=pl.CostEstimate(flops=flops, transcendentals=0,
                                      bytes_accessed=bytes_accessed),
    )(xp, wmat, bvec)
    return conv_out, relu_out


# --------------------------- synthetic backbone -----------------------------

class TinyConvBackbone:
    """Small deterministic backbone with named children conv1/relu1/conv2/relu2.

    Each (convN, reluN) pair runs as ONE fused Pallas kernel that emits both the
    pre-ReLU and post-ReLU outputs, so the per-child hooks still observe every
    named child's output.  Activations stay channel-padded to 128 lanes between
    blocks (lane-dense stores / MXU-aligned K for block 2).
    """

    def __init__(self, w1, b1, w2, b2):
        self.blocks = [
            ("conv1", "relu1", w1, b1, int(w1.shape[-1])),
            ("conv2", "relu2", w2, b2, int(w2.shape[-1])),
        ]

    def __call__(self, x_nhwc, hook=None):
        h = x_nhwc
        out = None
        for conv_name, relu_name, w, b, cout in self.blocks:
            conv_pad, relu_pad = conv3x3_bias_relu_fused(h, w, b)
            if hook is not None:
                hook(conv_name, conv_pad[..., :cout])   # pre-ReLU child output
                hook(relu_name, relu_pad[..., :cout])   # post-ReLU child output
            h = relu_pad          # keep 128-padded channels (lane dense) between blocks
            out = relu_pad[..., :cout]
        return out


# -------------------------- VerboseExecution port ---------------------------

class VerboseExecution:
    """JAX/Pallas port of fortorch.visualization.VerboseExecution.

    __call__ mirrors the PyTorch forward: runs the wrapped model, the "hooks"
    print each named child's output shape (NCHW convention) and store
    [name, NHWC numpy output] in self.layer_output, and the ORIGINAL input x is
    returned unchanged.  Host copies are deferred to one device_get at the end
    (no per-layer sync).
    """

    # TODO(synk): PyTorch's register_forward_hook has no Pallas/JAX equivalent;
    # hooks are emulated via an explicit callback threaded through the model.

    def __init__(self, model, permute=True):
        self.model = model
        self.layer_output = []
        self._permute = permute

    def __call__(self, x_nchw):
        pending = []

        def hook(name, out_nhwc):
            # hook 1: print (static shape metadata only, no device sync)
            nchw_shape = (out_nhwc.shape[0], out_nhwc.shape[3],
                          out_nhwc.shape[1], out_nhwc.shape[2])
            print(f"{name}: {nchw_shape}")
            # hook 2: collect; PyTorch permutes NCHW->NHWC, we already are NHWC.
            stored = out_nhwc if self._permute else jnp.transpose(out_nhwc, (0, 3, 1, 2))
            pending.append([name, stored])            # device array, no sync yet

        h = jnp.transpose(x_nchw, (0, 2, 3, 1))       # NCHW -> NHWC layout glue
        self.model(h, hook=hook)

        # Single deferred device->host transfer for all hooked outputs.
        host_arrays = jax.device_get([arr for _, arr in pending])
        for (name, _), arr in zip(pending, host_arrays):
            self.layer_output.append([name, np.asarray(arr)])

        return x_nchw                                 # identity return (no_grad eval)


# ---------------------------------- main ------------------------------------

def _conv_ref_nhwc(x, w, b):
    y = jax.lax.conv_general_dilated(
        x, w, window_strides=(1, 1), padding="SAME",
        dimension_numbers=("NHWC", "HWIO", "NHWC"))
    return y + b


if __name__ == "__main__":
    key = jax.random.PRNGKey(0)
    kx, k1, k2, k3, k4 = jax.random.split(key, 5)

    B, Cin, H, W = 2, 4, 16, 16
    C1, C2 = 8, 16
    x_nchw = jax.random.normal(kx, (B, Cin, H, W), dtype=jnp.float32)
    w1 = 0.1 * jax.random.normal(k1, (3, 3, Cin, C1), dtype=jnp.float32)  # HWIO
    b1 = 0.1 * jax.random.normal(k2, (C1,), dtype=jnp.float32)
    w2 = 0.1 * jax.random.normal(k3, (3, 3, C1, C2), dtype=jnp.float32)   # HWIO
    b2 = 0.1 * jax.random.normal(k4, (C2,), dtype=jnp.float32)

    backbone = TinyConvBackbone(w1, b1, w2, b2)
    verbose_model = VerboseExecution(backbone, permute=True)
    out = verbose_model(x_nchw)
    out = jax.block_until_ready(out)

    # Correctness checks (silent unless they fail).
    # 1) forward returns its input unchanged.
    np.testing.assert_array_equal(np.asarray(out), np.asarray(x_nchw))
    # 2) hooked layer outputs match a pure-JAX reference of the backbone.
    x_nhwc = jnp.transpose(x_nchw, (0, 2, 3, 1))
    r1 = _conv_ref_nhwc(x_nhwc, w1, b1)
    r2 = jnp.maximum(r1, 0.0)
    r3 = _conv_ref_nhwc(r2, w2, b2)
    r4 = jnp.maximum(r3, 0.0)
    refs = [r1, r2, r3, r4]
    expected_names = ["conv1", "relu1", "conv2", "relu2"]
    assert len(verbose_model.layer_output) == 4
    for (name, got), ref, exp in zip(verbose_model.layer_output, refs, expected_names):
        assert name == exp
        np.testing.assert_allclose(got, np.asarray(ref), rtol=1e-5, atol=1e-5)

    print("KERNEL_OK")
</pallas_src>

<mosaic_0001>
module attributes {stable_mosaic.version = 11 : i64} {
  func.func @_conv3x3_bias_relu_kernel(%arg0: i32, %arg1: i32, %arg2: memref<1x18x18x4xf32, #tpu.memory_space<vmem>>, %arg3: memref<9x4x128xf32, #tpu.memory_space<vmem>>, %arg4: memref<1x128xf32, #tpu.memory_space<vmem>>, %arg5: memref<1x8x16x128xf32, #tpu.memory_space<vmem>>, %arg6: memref<1x8x16x128xf32, #tpu.memory_space<vmem>>) attributes {dimension_semantics = [#tpu.dimension_semantics<parallel>, #tpu.dimension_semantics<parallel>], iteration_bounds = array<i64: 2, 2>, scalar_prefetch = 0 : i64, scratch_operands = 0 : i64, tpu.core_type = #tpu.core_type<tc>, window_params = [{transform_indices = @transform_0, window_bounds = array<i64: 1, 18, 18, 4>}, {pipeline_mode = #tpu.pipeline_mode<synchronous>, transform_indices = @transform_1, window_bounds = array<i64: 9, 4, 128>}, {pipeline_mode = #tpu.pipeline_mode<synchronous>, transform_indices = @transform_2, window_bounds = array<i64: 1, 128>}, {transform_indices = @transform_3, window_bounds = array<i64: 1, 8, 16, 128>}, {transform_indices = @transform_4, window_bounds = array<i64: 1, 8, 16, 128>}]} {
    %c8_i32 = arith.constant 8 : i32
    %0 = arith.muli %arg1, %c8_i32 : i32
    %cst = arith.constant 0.000000e+00 : f32
    %1 = vector.broadcast %cst : f32 to vector<128x128xf32>
    %c0_i32 = arith.constant 0 : i32
    %2 = arith.addi %0, %c0_i32 : i32
    %c0 = arith.constant 0 : index
    %3 = arith.index_cast %2 : i32 to index
    %c0_0 = arith.constant 0 : index
    %c0_1 = arith.constant 0 : index
    %4 = vector.load %arg2[%c0, %3, %c0_0, %c0_1] : memref<1x18x18x4xf32, #tpu.memory_space<vmem>>, vector<1x8x16x4xf32>
    %5 = vector.shape_cast %4 : vector<1x8x16x4xf32> to vector<128x4xf32>
    %c0_2 = arith.constant 0 : index
    %c0_3 = arith.constant 0 : index
    %c0_4 = arith.constant 0 : index
    %6 = vector.load %arg3[%c0_2, %c0_3, %c0_4] : memref<9x4x128xf32, #tpu.memory_space<vmem>>, vector<1x4x128xf32>
    %7 = vector.shape_cast %6 : vector<1x4x128xf32> to vector<4x128xf32>
    %cst_5 = arith.constant dense<0.000000e+00> : vector<128x128xf32>
    %8 = tpu.matmul %5, %7, %cst_5 {dimension_numbers = #tpu.dot_dimension_numbers<[1], [0], [0], [1], [0, 0, 1, 1], [], []>} : vector<128x4xf32>, vector<4x128xf32>, vector<128x128xf32> -> vector<128x128xf32>
    %9 = arith.addf %1, %8 : vector<128x128xf32>
    %c0_i32_6 = arith.constant 0 : i32
    %10 = arith.addi %0, %c0_i32_6 : i32
    %c0_7 = arith.constant 0 : index
    %11 = arith.index_cast %10 : i32 to index
    %c1 = arith.constant 1 : index
    %c0_8 = arith.constant 0 : index
    %12 = vector.load %arg2[%c0_7, %11, %c1, %c0_8] : memref<1x18x18x4xf32, #tpu.memory_space<vmem>>, vector<1x8x16x4xf32>
    %13 = vector.shape_cast %12 : vector<1x8x16x4xf32> to vector<128x4xf32>
    %c1_9 = arith.constant 1 : index
    %c0_10 = arith.constant 0 : index
    %c0_11 = arith.constant 0 : index
    %14 = vector.load %arg3[%c1_9, %c0_10, %c0_11] : memref<9x4x128xf32, #tpu.memory_space<vmem>>, vector<1x4x128xf32>
    %15 = vector.shape_cast %14 : vector<1x4x128xf32> to vector<4x128xf32>
    %cst_12 = arith.constant dense<0.000000e+00> : vector<128x128xf32>
    %16 = tpu.matmul %13, %15, %cst_12 {dimension_numbers = #tpu.dot_dimension_numbers<[1], [0], [0], [1], [0, 0, 1, 1], [], []>} : vector<128x4xf32>, vector<4x128xf32>, vector<128x128xf32> -> vector<128x128xf32>
    %17 = arith.addf %9, %16 : vector<128x128xf32>
    %c0_i32_13 = arith.constant 0 : i32
    %18 = arith.addi %0, %c0_i32_13 : i32
    %c0_14 = arith.constant 0 : index
    %19 = arith.index_cast %18 : i32 to index
    %c2 = arith.constant 2 : index
    %c0_15 = arith.constant 0 : index
    %20 = vector.load %arg2[%c0_14, %19, %c2, %c0_15] : memref<1x18x18x4xf32, #tpu.memory_space<vmem>>, vector<1x8x16x4xf32>
    %21 = vector.shape_cast %20 : vector<1x8x16x4xf32> to vector<128x4xf32>
    %c2_16 = arith.constant 2 : index
    %c0_17 = arith.constant 0 : index
    %c0_18 = arith.constant 0 : index
    %22 = vector.load %arg3[%c2_16, %c0_17, %c0_18] : memref<9x4x128xf32, #tpu.memory_space<vmem>>, vector<1x4x128xf32>
    %23 = vector.shape_cast %22 : vector<1x4x128xf32> to vector<4x128xf32>
    %cst_19 = arith.constant dense<0.000000e+00> : vector<128x128xf32>
    %24 = tpu.matmul %21, %23, %cst_19 {dimension_numbers = #tpu.dot_dimension_numbers<[1], [0], [0], [1], [0, 0, 1, 1], [], []>} : vector<128x4xf32>, vector<4x128xf32>, vector<128x128xf32> -> vector<128x128xf32>
    %25 = arith.addf %17, %24 : vector<128x128xf32>
    %c1_i32 = arith.constant 1 : i32
    %26 = arith.addi %0, %c1_i32 : i32
    %c0_20 = arith.constant 0 : index
    %27 = arith.index_cast %26 : i32 to index
    %c0_21 = arith.constant 0 : index
    %c0_22 = arith.constant 0 : index
    %28 = vector.load %arg2[%c0_20, %27, %c0_21, %c0_22] : memref<1x18x18x4xf32, #tpu.memory_space<vmem>>, vector<1x8x16x4xf32>
    %29 = vector.shape_cast %28 : vector<1x8x16x4xf32> to vector<128x4xf32>
    %c3 = arith.constant 3 : index
    %c0_23 = arith.constant 0 : index
    %c0_24 = arith.constant 0 : index
    %30 = vector.load %arg3[%c3, %c0_23, %c0_24] : memref<9x4x128xf32, #tpu.memory_space<vmem>>, vector<1x4x128xf32>
    %31 = vector.shape_cast %30 : vector<1x4x128xf32> to vector<4x128xf32>
    %cst_25 = arith.constant dense<0.000000e+00> : vector<128x128xf32>
    %32 = tpu.matmul %29, %31, %cst_25 {dimension_numbers = #tpu.dot_dimension_numbers<[1], [0], [0], [1], [0, 0, 1, 1], [], []>} : vector<128x4xf32>, vector<4x128xf32>, vector<128x128xf32> -> vector<128x128xf32>
    %33 = arith.addf %25, %32 : vector<128x128xf32>
    %c1_i32_26 = arith.constant 1 : i32
    %34 = arith.addi %0, %c1_i32_26 : i32
    %c0_27 = arith.constant 0 : index
    %35 = arith.index_cast %34 : i32 to index
    %c1_28 = arith.constant 1 : index
    %c0_29 = arith.constant 0 : index
    %36 = vector.load %arg2[%c0_27, %35, %c1_28, %c0_29] : memref<1x18x18x4xf32, #tpu.memory_space<vmem>>, vector<1x8x16x4xf32>
    %37 = vector.shape_cast %36 : vector<1x8x16x4xf32> to vector<128x4xf32>
    %c4 = arith.constant 4 : index
    %c0_30 = arith.constant 0 : index
    %c0_31 = arith.constant 0 : index
    %38 = vector.load %arg3[%c4, %c0_30, %c0_31] : memref<9x4x128xf32, #tpu.memory_space<vmem>>, vector<1x4x128xf32>
    %39 = vector.shape_cast %38 : vector<1x4x128xf32> to vector<4x128xf32>
    %cst_32 = arith.constant dense<0.000000e+00> : vector<128x128xf32>
    %40 = tpu.matmul %37, %39, %cst_32 {dimension_numbers = #tpu.dot_dimension_numbers<[1], [0], [0], [1], [0, 0, 1, 1], [], []>} : vector<128x4xf32>, vector<4x128xf32>, vector<128x128xf32> -> vector<128x128xf32>
    %41 = arith.addf %33, %40 : vector<128x128xf32>
    %c1_i32_33 = arith.constant 1 : i32
    %42 = arith.addi %0, %c1_i32_33 : i32
    %c0_34 = arith.constant 0 : index
    %43 = arith.index_cast %42 : i32 to index
    %c2_35 = arith.constant 2 : index
    %c0_36 = arith.constant 0 : index
    %44 = vector.load %arg2[%c0_34, %43, %c2_35, %c0_36] : memref<1x18x18x4xf32, #tpu.memory_space<vmem>>, vector<1x8x16x4xf32>
    %45 = vector.shape_cast %44 : vector<1x8x16x4xf32> to vector<128x4xf32>
    %c5 = arith.constant 5 : index
    %c0_37 = arith.constant 0 : index
    %c0_38 = arith.constant 0 : index
    %46 = vector.load %arg3[%c5, %c0_37, %c0_38] : memref<9x4x128xf32, #tpu.memory_space<vmem>>, vector<1x4x128xf32>
    %47 = vector.shape_cast %46 : vector<1x4x128xf32> to vector<4x128xf32>
    %cst_39 = arith.constant dense<0.000000e+00> : vector<128x128xf32>
    %48 = tpu.matmul %45, %47, %cst_39 {dimension_numbers = #tpu.dot_dimension_numbers<[1], [0], [0], [1], [0, 0, 1, 1], [], []>} : vector<128x4xf32>, vector<4x128xf32>, vector<128x128xf32> -> vector<128x128xf32>
    %49 = arith.addf %41, %48 : vector<128x128xf32>
    %c2_i32 = arith.constant 2 : i32
    %50 = arith.addi %0, %c2_i32 : i32
    %c0_40 = arith.constant 0 : index
    %51 = arith.index_cast %50 : i32 to index
    %c0_41 = arith.constant 0 : index
    %c0_42 = arith.constant 0 : index
    %52 = vector.load %arg2[%c0_40, %51, %c0_41, %c0_42] : memref<1x18x18x4xf32, #tpu.memory_space<vmem>>, vector<1x8x16x4xf32>
    %53 = vector.shape_cast %52 : vector<1x8x16x4xf32> to vector<128x4xf32>
    %c6 = arith.constant 6 : index
    %c0_43 = arith.constant 0 : index
    %c0_44 = arith.constant 0 : index
    %54 = vector.load %arg3[%c6, %c0_43, %c0_44] : memref<9x4x128xf32, #tpu.memory_space<vmem>>, vector<1x4x128xf32>
    %55 = vector.shape_cast %54 : vector<1x4x128xf32> to vector<4x128xf32>
    %cst_45 = arith.constant dense<0.000000e+00> : vector<128x128xf32>
    %56 = tpu.matmul %53, %55, %cst_45 {dimension_numbers = #tpu.dot_dimension_numbers<[1], [0], [0], [1], [0, 0, 1, 1], [], []>} : vector<128x4xf32>, vector<4x128xf32>, vector<128x128xf32> -> vector<128x128xf32>
    %57 = arith.addf %49, %56 : vector<128x128xf32>
    %c2_i32_46 = arith.constant 2 : i32
    %58 = arith.addi %0, %c2_i32_46 : i32
    %c0_47 = arith.constant 0 : index
    %59 = arith.index_cast %58 : i32 to index
    %c1_48 = arith.constant 1 : index
    %c0_49 = arith.constant 0 : index
    %60 = vector.load %arg2[%c0_47, %59, %c1_48, %c0_49] : memref<1x18x18x4xf32, #tpu.memory_space<vmem>>, vector<1x8x16x4xf32>
    %61 = vector.shape_cast %60 : vector<1x8x16x4xf32> to vector<128x4xf32>
    %c7 = arith.constant 7 : index
    %c0_50 = arith.constant 0 : index
    %c0_51 = arith.constant 0 : index
    %62 = vector.load %arg3[%c7, %c0_50, %c0_51] : memref<9x4x128xf32, #tpu.memory_space<vmem>>, vector<1x4x128xf32>
    %63 = vector.shape_cast %62 : vector<1x4x128xf32> to vector<4x128xf32>
    %cst_52 = arith.constant dense<0.000000e+00> : vector<128x128xf32>
    %64 = tpu.matmul %61, %63, %cst_52 {dimension_numbers = #tpu.dot_dimension_numbers<[1], [0], [0], [1], [0, 0, 1, 1], [], []>} : vector<128x4xf32>, vector<4x128xf32>, vector<128x128xf32> -> vector<128x128xf32>
    %65 = arith.addf %57, %64 : vector<128x128xf32>
    %c2_i32_53 = arith.constant 2 : i32
    %66 = arith.addi %0, %c2_i32_53 : i32
    %c0_54 = arith.constant 0 : index
    %67 = arith.index_cast %66 : i32 to index
    %c2_55 = arith.constant 2 : index
    %c0_56 = arith.constant 0 : index
    %68 = vector.load %arg2[%c0_54, %67, %c2_55, %c0_56] : memref<1x18x18x4xf32, #tpu.memory_space<vmem>>, vector<1x8x16x4xf32>
    %69 = vector.shape_cast %68 : vector<1x8x16x4xf32> to vector<128x4xf32>
    %c8 = arith.constant 8 : index
    %c0_57 = arith.constant 0 : index
    %c0_58 = arith.constant 0 : index
    %70 = vector.load %arg3[%c8, %c0_57, %c0_58] : memref<9x4x128xf32, #tpu.memory_space<vmem>>, vector<1x4x128xf32>
    %71 = vector.shape_cast %70 : vector<1x4x128xf32> to vector<4x128xf32>
    %cst_59 = arith.constant dense<0.000000e+00> : vector<128x128xf32>
    %72 = tpu.matmul %69, %71, %cst_59 {dimension_numbers = #tpu.dot_dimension_numbers<[1], [0], [0], [1], [0, 0, 1, 1], [], []>} : vector<128x4xf32>, vector<4x128xf32>, vector<128x128xf32> -> vector<128x128xf32>
    %73 = arith.addf %65, %72 : vector<128x128xf32>
    %c0_60 = arith.constant 0 : index
    %c0_61 = arith.constant 0 : index
    %74 = vector.load %arg4[%c0_60, %c0_61] : memref<1x128xf32, #tpu.memory_space<vmem>>, vector<1x128xf32>
    %75 = vector.broadcast %74 : vector<1x128xf32> to vector<128x128xf32>
    %76 = arith.addf %73, %75 : vector<128x128xf32>
    %77 = vector.shape_cast %76 : vector<128x128xf32> to vector<1x8x16x128xf32>
    %c0_62 = arith.constant 0 : index
    %c0_63 = arith.constant 0 : index
    %c0_64 = arith.constant 0 : index
    %c0_65 = arith.constant 0 : index
    %78 = vector.load %arg5[%c0_62, %c0_63, %c0_64, %c0_65] : memref<1x8x16x128xf32, #tpu.memory_space<vmem>>, vector<1x8x16x128xf32>
    tpu.vector_store %arg5[%c0_62, %c0_63, %c0_64, %c0_65], %77 {strides = array<i32>} : memref<1x8x16x128xf32, #tpu.memory_space<vmem>>, vector<1x8x16x128xf32>,
    %cst_66 = arith.constant 0.000000e+00 : f32
    %79 = vector.broadcast %cst_66 : f32 to vector<128x128xf32>
    %80 = arith.maximumf %76, %79 : vector<128x128xf32>
    %81 = vector.shape_cast %80 : vector<128x128xf32> to vector<1x8x16x128xf32>
    %c0_67 = arith.constant 0 : index
    %c0_68 = arith.constant 0 : index
    %c0_69 = arith.constant 0 : index
    %c0_70 = arith.constant 0 : index
    %82 = vector.load %arg6[%c0_67, %c0_68, %c0_69, %c0_70] : memref<1x8x16x128xf32, #tpu.memory_space<vmem>>, vector<1x8x16x128xf32>
    tpu.vector_store %arg6[%c0_67, %c0_68, %c0_69, %c0_70], %81 {strides = array<i32>} : memref<1x8x16x128xf32, #tpu.memory_space<vmem>>, vector<1x8x16x128xf32>,
    return
  }
  func.func @transform_0(%arg0: i32, %arg1: i32) -> (i32, i32, i32, i32) {
    %c0_i32 = arith.constant 0 : i32
    %c0_i32_0 = arith.constant 0 : i32
    %c0_i32_1 = arith.constant 0 : i32
    %c0_i32_2 = arith.constant 0 : i32
    return %arg0, %c0_i32, %c0_i32_0, %c0_i32_1 : i32, i32, i32, i32
  }
  func.func @transform_1(%arg0: i32, %arg1: i32) -> (i32, i32, i32) {
    %c0_i32 = arith.constant 0 : i32
    %c0_i32_0 = arith.constant 0 : i32
    %c0_i32_1 = arith.constant 0 : i32
    %c0_i32_2 = arith.constant 0 : i32
    return %c0_i32, %c0_i32_0, %c0_i32_1 : i32, i32, i32
  }
  func.func @transform_2(%arg0: i32, %arg1: i32) -> (i32, i32) {
    %c0_i32 = arith.constant 0 : i32
    %c0_i32_0 = arith.constant 0 : i32
    %c0_i32_1 = arith.constant 0 : i32
    return %c0_i32, %c0_i32_0 : i32, i32
  }
  func.func @transform_3(%arg0: i32, %arg1: i32) -> (i32, i32, i32, i32) {
    %c0_i32 = arith.constant 0 : i32
    %c0_i32_0 = arith.constant 0 : i32
    %c0_i32_1 = arith.constant 0 : i32
    return %arg0, %arg1, %c0_i32, %c0_i32_0 : i32, i32, i32, i32
  }
  func.func @transform_4(%arg0: i32, %arg1: i32) -> (i32, i32, i32, i32) {
    %c0_i32 = arith.constant 0 : i32
    %c0_i32_0 = arith.constant 0 : i32
    %c0_i32_1 = arith.constant 0 : i32
    return %arg0, %arg1, %c0_i32, %c0_i32_0 : i32, i32, i32, i32
  }
}

</mosaic_0001>

<llo_original>
// kernel: tpu_custom_call.1
$region0: #{tpu_custom_call.1}
  #allocation0 [shape = 'u32[]', space=smem, size = 0x4, offset = 0x4, fixed_abs, tag = 'smem constant byte address 0x4 - core index']
  #allocation1 [shape = 'u32[144,128]{1,0:T(1,128)}', space=vmem, size = 0x12000, scoped, tag = 'internal scratch']
  %s0 = inlined_call_operand.vmem [shape: f32[2,18,18,4], index: 0, kind: input, shape index: {}]
  %s1 = inlined_call_operand.vmem [shape: f32[9,4,128], index: 1, kind: input, shape index: {}]
  %s2 = inlined_call_operand.vmem [shape: f32[1,128], index: 2, kind: input, shape index: {}]
  %s3 = inlined_call_operand.hbm [shape: f32[2,16,16,128], index: 3, kind: output, shape index: {0}]
  %s4 = inlined_call_operand.hbm [shape: f32[2,16,16,128], index: 4, kind: output, shape index: {1}]
  %5 = xla_tuple %s3, %s4
  %s6 = sld [smem:[#allocation0]]
  $region53: #{tpu_custom_call.1} parent=0
    _
  %s8 = ssub.s32 1, %s6
  %s9 = scalar_select 0, %s8, %s6
  $region1: #{tpu_custom_call.1} parent=0
    #allocation2 [shape = 'u8[131072]{0}', space=vmem, size = 0x20000, scoped, tag = 'output window, operand 0']
    #allocation3 [shape = 's32[2]{0}', space=sflag, size = 0x8, scoped, tag = 'scoped memory for tpu_custom_call.1']
    #allocation4 [shape = 'u8[131072]{0}', space=vmem, size = 0x20000, scoped, tag = 'output window, operand 1']
    #allocation5 [shape = 's32[2]{0}', space=sflag, size = 0x8, scoped, tag = 'scoped memory for tpu_custom_call.1']
    %10 = vsyncpa [#allocation3], 0
    %s11 = scalar_lea.sflag [#allocation3], 1
    %12 = vsyncpa %s11, 0
    %13 = vsyncpa [#allocation5], 0
    %s14 = scalar_lea.sflag [#allocation5], 1
    %15 = vsyncpa %s14, 0
    loop: start=0, step=1, limit=6
    $region2: #{tpu_custom_call.1} parent=1 // loop_pre_header
      _
    $region3: #{tpu_custom_call.1} parent=1 // loop_header
      %s17 = sphi 0, %s21
      %p18 = scmp.ge.s32.totalorder %s17, 6
      %s24 = sphi 0, %s36
      %s25 = sphi 0, %s32
      %s26 = sphi 0, %s24
      %s27 = sphi 0, %s25
      %s28 = sphi 0, %s26
      %s29 = sphi 0, %s27
      %s39 = sphi 0, %s41
      %s42 = sphi 0, %s39
      %s43 = sphi 0, %s42
      %s59 = sphi 0, %s43
      %s63 = sphi 0, %s63
      %s65 = sphi 0, %s63
      %s66 = sphi 0, %s65
      %s80 = sphi 0, %s66
      %s84 = sphi 0, %s84
      %s86 = sphi 0, %s84
      %s87 = sphi 0, %s86
      %s101 = sphi 0, %s87
      %s109 = sphi 0, %s111
      %s112 = sphi 0, %s109
      %s113 = sphi 0, %s112
      %s129 = sphi 0, %s113
      %s137 = sphi 0, %s139
      %s140 = sphi 0, %s137
      %s141 = sphi 0, %s140
      %s157 = sphi 0, %s141
    $region4: #{tpu_custom_call.1} parent=1 // loop_header_branch
      %20 = sbr.rel (%p18) target = $region8
    $region5: #{tpu_custom_call.1} parent=1 // loop_body
      %s22 = ssub.s32 %s17, 1
      %s23 = ssub.s32 %s17, 2
      %s30 = sadd.s32 1, %s25
      %p31 = scmp.ge.s32.totalorder %s30, 2
      %s32 = scalar_select %p31, 0, %s30
      %s33 = sadd.s32 1, %s24
      %s34 = scalar_select %p31, %s33, %s24
      %p35 = scmp.ge.s32.totalorder %s34, 2
      %s36 = scalar_select %p35, 0, %s34
      %s37 = ssub.s32 %s24, %s36
      %p38 = scmp.eq.s32.totalorder %s37, 0
      %s40 = sadd.s32 %s39, 1
      %s41 = scalar_select %p38, %s39, %s40
      %p44 = pneg %p38
      %p45 = scmp.eq.s32.totalorder %s17, 3
      %p46 = por %p44, %p45
      %p47 = scmp.ne.s32.totalorder %s39, %s42
      %p48 = scmp.eq.s32.totalorder %s17, 0
      %p49 = por %p47, %p48
      %p50 = scmp.ne.s32.totalorder %s39, %s42
      %p51 = scmp.eq.s32.totalorder %s22, 3
      %p52 = por %p50, %p51
      %p53 = scmp.ne.s32.totalorder %s42, %s43
      %p54 = scmp.eq.s32.totalorder %s22, 0
      %p55 = por %p53, %p54
      %p56 = scmp.ne.s32.totalorder %s42, %s43
      %p57 = scmp.eq.s32.totalorder %s23, 3
      %p58 = por %p56, %p57
      %p60 = scmp.ne.s32.totalorder %s43, %s59
      %p61 = scmp.eq.s32.totalorder %s23, 0
      %p62 = por %p60, %p61
      %s64 = sadd.s32 %s63, 1
      %p67 = scmp.eq.s32.totalorder %s17, 3
      %p68 = scmp.ne.s32.totalorder %s63, %s65
      %p69 = scmp.eq.s32.totalorder %s17, 0
      %p70 = por %p68, %p69
      %p71 = scmp.ne.s32.totalorder %s63, %s65
      %p72 = scmp.eq.s32.totalorder %s22, 3
      %p73 = por %p71, %p72
      %p74 = scmp.ne.s32.totalorder %s65, %s66
      %p75 = scmp.eq.s32.totalorder %s22, 0
      %p76 = por %p74, %p75
      %p77 = scmp.ne.s32.totalorder %s65, %s66
      %p78 = scmp.eq.s32.totalorder %s23, 3
      %p79 = por %p77, %p78
      %p81 = scmp.ne.s32.totalorder %s66, %s80
      %p82 = scmp.eq.s32.totalorder %s23, 0
      %p83 = por %p81, %p82
      %s85 = sadd.s32 %s84, 1
      %p88 = scmp.eq.s32.totalorder %s17, 3
      %p89 = scmp.ne.s32.totalorder %s84, %s86
      %p90 = scmp.eq.s32.totalorder %s17, 0
      %p91 = por %p89, %p90
      %p92 = scmp.ne.s32.totalorder %s84, %s86
      %p93 = scmp.eq.s32.totalorder %s22, 3
      %p94 = por %p92, %p93
      %p95 = scmp.ne.s32.totalorder %s86, %s87
      %p96 = scmp.eq.s32.totalorder %s22, 0
      %p97 = por %p95, %p96
      %p98 = scmp.ne.s32.totalorder %s86, %s87
      %p99 = scmp.eq.s32.totalorder %s23, 3
      %p100 = por %p98, %p99
      %p102 = scmp.ne.s32.totalorder %s87, %s101
      %p103 = scmp.eq.s32.totalorder %s23, 0
      %p104 = por %p102, %p103
      %s105 = ssub.s32 %s24, %s36
      %s106 = ssub.s32 %s25, %s32
      %s107 = sor.u32 %s105, %s106
      %p108 = scmp.eq.s32.totalorder %s107, 0
      %s110 = sadd.s32 %s109, 1
      %s111 = scalar_select %p108, %s109, %s110
      %p114 = pneg %p108
      %p115 = scmp.eq.s32.totalorder %s17, 3
      %p116 = por %p114, %p115
      %p117 = scmp.ne.s32.totalorder %s109, %s112
      %p118 = scmp.eq.s32.totalorder %s17, 0
      %p119 = por %p117, %p118
      %p120 = scmp.ne.s32.totalorder %s109, %s112
      %p121 = scmp.eq.s32.totalorder %s22, 3
      %p122 = por %p120, %p121
      %p123 = scmp.ne.s32.totalorder %s112, %s113
      %p124 = scmp.eq.s32.totalorder %s22, 0
      %p125 = por %p123, %p124
      %p126 = scmp.ne.s32.totalorder %s112, %s113
      %p127 = scmp.eq.s32.totalorder %s23, 3
      %p128 = por %p126, %p127
      %p130 = scmp.ne.s32.totalorder %s113, %s129
      %p131 = scmp.eq.s32.totalorder %s23, 0
      %p132 = por %p130, %p131
      %s133 = ssub.s32 %s24, %s36
      %s134 = ssub.s32 %s25, %s32
      %s135 = sor.u32 %s133, %s134
      %p136 = scmp.eq.s32.totalorder %s135, 0
      %s138 = sadd.s32 %s137, 1
      %s139 = scalar_select %p136, %s137, %s138
      %p142 = pneg %p136
      %p143 = scmp.eq.s32.totalorder %s17, 3
      %p144 = por %p142, %p143
      %p145 = scmp.ne.s32.totalorder %s137, %s140
      %p146 = scmp.eq.s32.totalorder %s17, 0
      %p147 = por %p145, %p146
      %p148 = scmp.ne.s32.totalorder %s137, %s140
      %p149 = scmp.eq.s32.totalorder %s22, 3
      %p150 = por %p148, %p149
      %p151 = scmp.ne.s32.totalorder %s140, %s141
      %p152 = scmp.eq.s32.totalorder %s22, 0
      %p153 = por %p151, %p152
      %p154 = scmp.ne.s32.totalorder %s140, %s141
      %p155 = scmp.eq.s32.totalorder %s23, 3
      %p156 = por %p154, %p155
      %p158 = scmp.ne.s32.totalorder %s141, %s157
      %p159 = scmp.eq.s32.totalorder %s23, 0
      %p160 = por %p158, %p159
      %p161 = scmp.le.s32.totalorder 1, %s17
      %p162 = scmp.lt.s32.totalorder %s17, 5
      %p163 = pnand %p161, %p162
      %p164 = pneg %p163
      // Predicated region
      $region9: #{tpu_custom_call.1} parent=5 // pred_check
        _
      $region10: #{tpu_custom_call.1} parent=5 // pred_check_branch
        %166 = sbr.rel (%p163) target = $region12
      $region11: #{tpu_custom_call.1} parent=5 // pred_region
        %s167 = ssub.s32 %s17, 1
        // Predicated region
        $region13: #{tpu_custom_call.1} parent=11 // pred_check
          %p168 = pneg %p76
        $region14: #{tpu_custom_call.1} parent=11 // pred_check_branch
          %170 = sbr.rel (%p168) target = $region16
        $region15: #{tpu_custom_call.1} parent=11 // pred_region
          _
        $region16: #{tpu_custom_call.1} parent=11 // pred_fallthru
          _
        // Predicated region
        $region17: #{tpu_custom_call.1} parent=11 // pred_check
          %p171 = pneg %p97
        $region18: #{tpu_custom_call.1} parent=11 // pred_check_branch
          %173 = sbr.rel (%p171) target = $region20
        $region19: #{tpu_custom_call.1} parent=11 // pred_region
          _
        $region20: #{tpu_custom_call.1} parent=11 // pred_fallthru
          _
      $region12: #{tpu_custom_call.1} parent=5 // pred_fallthru
        _
      %p174 = scmp.lt.s32.totalorder %s17, 4
      // Predicated region
      $region21: #{tpu_custom_call.1} parent=5 // pred_check
        %p175 = pneg %p174
      $region22: #{tpu_custom_call.1} parent=5 // pred_check_branch
        %177 = sbr.rel (%p175) target = $region24
      $region23: #{tpu_custom_call.1} parent=5 // pred_region
        // Predicated region
        $region25: #{tpu_custom_call.1} parent=23 // pred_check
          %p178 = pneg %p49
        $region26: #{tpu_custom_call.1} parent=23 // pred_check_branch
          %180 = sbr.rel (%p178) target = $region28
        $region27: #{tpu_custom_call.1} parent=23 // pred_region
          %p181 = scmp.lt.s32.totalorder %s24, 1
          %s182 = scalar_select %p181, %s24, 1
          %s183 = smul.addr %s182, 54
          %s184 = smul.addr %s183, 8
          %s185 = scalar_lea.vmem %s0, %s184
        $region28: #{tpu_custom_call.1} parent=23 // pred_fallthru
          _
      $region24: #{tpu_custom_call.1} parent=5 // pred_fallthru
        _
      %p186 = scmp.le.s32.totalorder 1, %s17
      %p187 = scmp.lt.s32.totalorder %s17, 5
      %p188 = pnand %p186, %p187
      %p189 = pneg %p188
      // Predicated region
      $region29: #{tpu_custom_call.1} parent=5 // pred_check
        _
      $region30: #{tpu_custom_call.1} parent=5 // pred_check_branch
        %191 = sbr.rel (%p188) target = $region32
      $region31: #{tpu_custom_call.1} parent=5 // pred_region
        %s192 = ssub.s32 %s17, 1
        %p193 = scmp.lt.s32.totalorder %s26, 1
        %s194 = scalar_select %p193, %s26, 1
        %s195 = smul.addr %s194, 54
        %s196 = smul.addr %s195, 8
        %s197 = scalar_lea.vmem %s0, %s196
        %p198 = pneg %p55
        %p199 = pneg %p52
        %p200 = pneg %p76
        %p201 = pneg %p73
        %p202 = pneg %p97
        %p203 = pneg %p94
        %p204 = pneg %p125
        %p205 = pneg %p122
        %s206 = sand.u32 %s112, 1
        %s207 = scalar_lea.sflag [#allocation3], %s206
        %s208 = sand.u32 %s112, 1
        %s209 = smul.addr %s208, 128
        %s210 = scalar_lea.vmem [#allocation2], %s209
        %p211 = pneg %p153
        %p212 = pneg %p150
        %s213 = sand.u32 %s140, 1
        %s214 = scalar_lea.sflag [#allocation5], %s213
        %s215 = sand.u32 %s140, 1
        %s216 = smul.addr %s215, 128
        %s217 = scalar_lea.vmem [#allocation4], %s216
        %p218 = scmp.lt.s32.totalorder %s26, 1
        %s219 = scalar_select %p218, %s26, 1
        %s220 = smul.addr %s219, 54
        %s221 = smul.addr %s220, 8
        %s222 = scalar_lea.vmem %s0, %s221
        %s223 = smul.u32 8, %s27
        %s224 = smul.u32 8, %s27
        %s225 = smul.u32 %s27, 8
        %s226 = smul.u32 %s225, 24
        %s227 = scalar_lea.vmem %s222, %s226
        %v228 = vld [vmem:[%s227] sm:$0xff]
        %v229 = vld [vmem:[%s227 + $0x8] sm:$0xff]
        %v230 = vld [vmem:[%s227 + $0x18] sm:$0xff]
        %v231 = vld [vmem:[%s227 + $0x20] sm:$0xff]
        %v232 = vld [vmem:[%s227 + $0x30] sm:$0xff]
        %v233 = vld [vmem:[%s227 + $0x38] sm:$0xff]
        %v234 = vld [vmem:[%s227 + $0x48] sm:$0xff]
        %v235 = vld [vmem:[%s227 + $0x50] sm:$0xff]
        %v236 = vld [vmem:[%s227 + $0x60] sm:$0xff]
        %v237 = vld [vmem:[%s227 + $0x68] sm:$0xff]
        %v238 = vld [vmem:[%s227 + $0x78] sm:$0xff]
        %v239 = vld [vmem:[%s227 + $0x80] sm:$0xff]
        %v240 = vld [vmem:[%s227 + $0x90] sm:$0xff]
        %v241 = vld [vmem:[%s227 + $0x98] sm:$0xff]
        %v242 = vld [vmem:[%s227 + $0xa8] sm:$0xff]
        %v243 = vld [vmem:[%s227 + $0xb0] sm:$0xff]
        %v244 = vld [vmem:[%s1] sm:$0xf]
        %v245 = vld [vmem:[%s227 + $0x1] sm:$0xff]
        %v246 = vld [vmem:[%s227 + $0x9] sm:$0xff]
        %v247 = vld [vmem:[%s227 + $0x19] sm:$0xff]
        %v248 = vld [vmem:[%s227 + $0x21] sm:$0xff]
        %v249 = vld [vmem:[%s227 + $0x31] sm:$0xff]
        %v250 = vld [vmem:[%s227 + $0x39] sm:$0xff]
        %v251 = vld [vmem:[%s227 + $0x49] sm:$0xff]
        %v252 = vld [vmem:[%s227 + $0x51] sm:$0xff]
        %v253 = vld [vmem:[%s227 + $0x61] sm:$0xff]
        %v254 = vld [vmem:[%s227 + $0x69] sm:$0xff]
        %v255 = vld [vmem:[%s227 + $0x79] sm:$0xff]
        %v256 = vld [vmem:[%s227 + $0x81] sm:$0xff]
        %v257 = vld [vmem:[%s227 + $0x91] sm:$0xff]
        %v258 = vld [vmem:[%s227 + $0x99] sm:$0xff]
        %v259 = vld [vmem:[%s227 + $0xa9] sm:$0xff]
        %v260 = vld [vmem:[%s227 + $0xb1] sm:$0xff]
        %s261 = scalar_lea.vmem %s1, 4
        %v262 = vld [vmem:[%s261] sm:$0xf]
        %vm263 = vcmask 31744
        %v265 = vsel %vm263, %v245, 0
        %v268 = vsel %vm263, %v246, 0
        %v271 = vsel %vm263, %v247, 0
        %v274 = vsel %vm263, %v248, 0
        %v277 = vsel %vm263, %v249, 0
        %v280 = vsel %vm263, %v250, 0
        %v283 = vsel %vm263, %v251, 0
        %v286 = vsel %vm263, %v252, 0
        %v289 = vsel %vm263, %v253, 0
        %v292 = vsel %vm263, %v254, 0
        %v295 = vsel %vm263, %v255, 0
        %v298 = vsel %vm263, %v256, 0
        %v301 = vsel %vm263, %v257, 0
        %v304 = vsel %vm263, %v258, 0
        %v307 = vsel %vm263, %v259, 0
        %v310 = vsel %vm263, %v260, 0
        %vm312 = vcmask 1043456
        %v314 = vsel %vm312, %v262, 0
        %316 = vmatprep.subr.mxu0 0.0
        %317 = vmatpush1.msra.mxu0 %v314
        %318 = vmatprep.subr.mxu0 0.0
        %319 = vmatpush1.msra.mxu0 0.0
        %320 = vmatprep.subr.mxu0 0.0
        %321 = vmatpush1.msra.mxu0 0.0
        %322 = vmatprep.subr.mxu0 0.0
        %323 = vmatpush1.msra.mxu0 0.0
        %324 = vmatprep.subr.mxu0 0.0
        %325 = vmatpush1.msra.mxu0 0.0
        %326 = vmatprep.subr.mxu0 0.0
        %327 = vmatpush1.msra.mxu0 0.0
        %328 = vmatprep.subr.mxu0 0.0
        %329 = vmatpush1.msra.mxu0 0.0
        %330 = vmatprep.subr.mxu0 0.0
        %331 = vmatpush1.msra.mxu0 0.0
        %332 = vmatprep.subr.mxu0 0.0
        %333 = vmatpush1.msra.mxu0 0.0
        %334 = vmatprep.subr.mxu0 0.0
        %335 = vmatpush1.msra.mxu0 0.0
        %336 = vmatprep.subr.mxu0 0.0
        %337 = vmatpush1.msra.mxu0 0.0
        %338 = vmatprep.subr.mxu0 0.0
        %339 = vmatpush1.msra.mxu0 0.0
        %340 = vmatprep.subr.mxu0 0.0
        %341 = vmatpush1.msra.mxu0 0.0
        %342 = vmatprep.subr.mxu0 0.0
        %343 = vmatpush1.msra.mxu0 0.0
        %344 = vmatprep.subr.mxu0 0.0
        %345 = vmatpush1.msra.mxu0 0.0
        %346 = vmatprep.subr.mxu0 0.0
        %347 = vmatpush1.msra.mxu0 0.0
        %348 = vmatprep.subr.mxu0 0.0
        %349 = vmatpush1.msra.mxu0 0.0
        %350 = vmatprep.subr.mxu0 0.0
        %351 = vmatpush1.msra.mxu0 0.0
        %352 = vmatprep.subr.mxu0 0.0
        %353 = vmatpush1.msra.mxu0 0.0
        %354 = vmatprep.subr.mxu0 0.0
        %355 = vmatpush1.msra.mxu0 0.0
        %356 = vmatprep.subr.mxu0 0.0
        %357 = vmatpush1.msra.mxu0 0.0
        %358 = vmatprep.subr.mxu0 0.0
        %359 = vmatpush1.msra.mxu0 0.0
        %360 = vmatprep.subr.mxu0 0.0
        %361 = vmatpush1.msra.mxu0 0.0
        %362 = vmatprep.subr.mxu0 0.0
        %363 = vmatpush1.msra.mxu0 0.0
        %364 = vmatprep.subr.mxu0 0.0
        %365 = vmatpush1.msra.mxu0 0.0
        %366 = vmatprep.subr.mxu0 0.0
        %367 = vmatpush1.msra.mxu0 0.0
        %368 = vmatprep.subr.mxu0 0.0
        %369 = vmatpush1.msra.mxu0 0.0
        %370 = vmatprep.subr.mxu0 0.0
        %371 = vmatpush1.msra.mxu0 0.0
        %372 = vmatprep.subr.mxu0 0.0
        %373 = vmatpush1.msra.mxu0 0.0
        %374 = vmatprep.subr.mxu0 0.0
        %375 = vmatpush1.msra.mxu0 0.0
        %376 = vmatprep.subr.mxu0 0.0
        %377 = vmatpush1.msra.mxu0 0.0
        %378 = vmatprep.subr.mxu0 0.0
        %379 = vmatpush1.msra.mxu0 0.0
        %380 = vmatprep.mubr.f32.mxu0 0.0
        %381 = vmatmul.mubr.f32.gmra.mrb[0].mxu0 %v265
        %v382 = vpop.f32.mrb[0].mxu0
        %v383 = vadd.f32 0.0, %v382
        %v384 = vpop.f32.mrb[0].mxu0
        %385 = vmatprep.mubr.f32.mxu0 0.0
        %386 = vmatmul.mubr.f32.gmra.mrb[0].mxu0 %v268
        %v387 = vpop.f32.mrb[0].mxu0
        %v388 = vadd.f32 0.0, %v387
        %v389 = vpop.f32.mrb[0].mxu0
        %390 = vmatprep.mubr.f32.mxu0 0.0
        %391 = vmatmul.mubr.f32.gmra.mrb[0].mxu0 %v271
        %v392 = vpop.f32.mrb[0].mxu0
        %v393 = vadd.f32 0.0, %v392
        %v394 = vpop.f32.mrb[0].mxu0
        %395 = vmatprep.mubr.f32.mxu0 0.0
        %396 = vmatmul.mubr.f32.gmra.mrb[0].mxu0 %v274
        %v397 = vpop.f32.mrb[0].mxu0
        %v398 = vadd.f32 0.0, %v397
        %v399 = vpop.f32.mrb[0].mxu0
        %400 = vmatprep.mubr.f32.mxu0 0.0
        %401 = vmatmul.mubr.f32.gmra.mrb[0].mxu0 %v277
        %v402 = vpop.f32.mrb[0].mxu0
        %v403 = vadd.f32 0.0, %v402
        %v404 = vpop.f32.mrb[0].mxu0
        %405 = vmatprep.mubr.f32.mxu0 0.0
        %406 = vmatmul.mubr.f32.gmra.mrb[0].mxu0 %v280
        %v407 = vpop.f32.mrb[0].mxu0
        %v408 = vadd.f32 0.0, %v407
        %v409 = vpop.f32.mrb[0].mxu0
        %410 = vmatprep.mubr.f32.mxu0 0.0
        %411 = vmatmul.mubr.f32.gmra.mrb[0].mxu0 %v283
        %v412 = vpop.f32.mrb[0].mxu0
        %v413 = vadd.f32 0.0, %v412
        %v414 = vpop.f32.mrb[0].mxu0
        %415 = vmatprep.mubr.f32.mxu0 0.0
        %416 = vmatmul.mubr.f32.gmra.mrb[0].mxu0 %v286
        %v417 = vpop.f32.mrb[0].mxu0
        %v418 = vadd.f32 0.0, %v417
        %v419 = vpop.f32.mrb[0].mxu0
        %420 = vmatprep.mubr.f32.mxu0 0.0
        %421 = vmatmul.mubr.f32.gmra.mrb[0].mxu0 %v289
        %v422 = vpop.f32.mrb[0].mxu0
        %v423 = vadd.f32 0.0, %v422
        %v424 = vpop.f32.mrb[0].mxu0
        %425 = vmatprep.mubr.f32.mxu0 0.0
        %426 = vmatmul.mubr.f32.gmra.mrb[0].mxu0 %v292
        %v427 = vpop.f32.mrb[0].mxu0
        %v428 = vadd.f32 0.0, %v427
        %v429 = vpop.f32.mrb[0].mxu0
        %430 = vmatprep.mubr.f32.mxu0 0.0
        %431 = vmatmul.mubr.f32.gmra.mrb[0].mxu0 %v295
        %v432 = vpop.f32.mrb[0].mxu0
        %v433 = vadd.f32 0.0, %v432
        %v434 = vpop.f32.mrb[0].mxu0
        %435 = vmatprep.mubr.f32.mxu0 0.0
        %436 = vmatmul.mubr.f32.gmra.mrb[0].mxu0 %v298
        %v437 = vpop.f32.mrb[0].mxu0
        %v438 = vadd.f32 0.0, %v437
        %v439 = vpop.f32.mrb[0].mxu0
        %440 = vmatprep.mubr.f32.mxu0 0.0
        %441 = vmatmul.mubr.f32.gmra.mrb[0].mxu0 %v301
        %v442 = vpop.f32.mrb[0].mxu0
        %v443 = vadd.f32 0.0, %v442
        %v444 = vpop.f32.mrb[0].mxu0
        %445 = vmatprep.mubr.f32.mxu0 0.0
        %446 = vmatmul.mubr.f32.gmra.mrb[0].mxu0 %v304
        %v447 = vpop.f32.mrb[0].mxu0
        %v448 = vadd.f32 0.0, %v447
        %v449 = vpop.f32.mrb[0].mxu0
        %450 = vmatprep.mubr.f32.mxu0 0.0
        %451 = vmatmul.mubr.f32.gmra.mrb[0].mxu0 %v307
        %v452 = vpop.f32.mrb[0].mxu0
        %v453 = vadd.f32 0.0, %v452
        %v454 = vpop.f32.mrb[0].mxu0
        %455 = vmatprep.mubr.f32.mxu0 0.0
        %456 = vmatmul.mubr.f32.gmra.mrb[0].mxu0 %v310
        %v457 = vpop.f32.mrb[0].mxu0
        %v458 = vadd.f32 0.0, %v457
        %v459 = vpop.f32.mrb[0].mxu0
        %460 = vdwg.mxu0
        %v462 = vsel %vm263, %v228, 0
        %v465 = vsel %vm263, %v229, 0
        %v468 = vsel %vm263, %v230, 0
        %v471 = vsel %vm263, %v231, 0
        %v474 = vsel %vm263, %v232, 0
        %v477 = vsel %vm263, %v233, 0
        %v480 = vsel %vm263, %v234, 0
        %v483 = vsel %vm263, %v235, 0
        %v486 = vsel %vm263, %v236, 0
        %v489 = vsel %vm263, %v237, 0
        %v492 = vsel %vm263, %v238, 0
        %v495 = vsel %vm263, %v239, 0
        %v498 = vsel %vm263, %v240, 0
        %v501 = vsel %vm263, %v241, 0
        %v504 = vsel %vm263, %v242, 0
        %v507 = vsel %vm263, %v243, 0
        %v510 = vsel %vm312, %v244, 0
        %512 = vmatprep.subr.mxu0 0.0
        %513 = vmatpush1.msra.mxu0 %v510
        %514 = vmatprep.subr.mxu0 0.0
        %515 = vmatpush1.msra.mxu0 0.0
        %516 = vmatprep.subr.mxu0 0.0
        %517 = vmatpush1.msra.mxu0 0.0
        %518 = vmatprep.subr.mxu0 0.0
        %519 = vmatpush1.msra.mxu0 0.0
        %520 = vmatprep.subr.mxu0 0.0
        %521 = vmatpush1.msra.mxu0 0.0
        %522 = vmatprep.subr.mxu0 0.0
        %523 = vmatpush1.msra.mxu0 0.0
        %524 = vmatprep.subr.mxu0 0.0
        %525 = vmatpush1.msra.mxu0 0.0
        %526 = vmatprep.subr.mxu0 0.0
        %527 = vmatpush1.msra.mxu0 0.0
        %528 = vmatprep.subr.mxu0 0.0
        %529 = vmatpush1.msra.mxu0 0.0
        %530 = vmatprep.subr.mxu0 0.0
        %531 = vmatpush1.msra.mxu0 0.0
        %532 = vmatprep.subr.mxu0 0.0
        %533 = vmatpush1.msra.mxu0 0.0
        %534 = vmatprep.subr.mxu0 0.0
        %535 = vmatpush1.msra.mxu0 0.0
        %536 = vmatprep.subr.mxu0 0.0
        %537 = vmatpush1.msra.mxu0 0.0
        %538 = vmatprep.subr.mxu0 0.0
        %539 = vmatpush1.msra.mxu0 0.0
        %540 = vmatprep.subr.mxu0 0.0
        %541 = vmatpush1.msra.mxu0 0.0
        %542 = vmatprep.subr.mxu0 0.0
        %543 = vmatpush1.msra.mxu0 0.0
        %544 = vmatprep.subr.mxu0 0.0
        %545 = vmatpush1.msra.mxu0 0.0
        %546 = vmatprep.subr.mxu0 0.0
        %547 = vmatpush1.msra.mxu0 0.0
        %548 = vmatprep.subr.mxu0 0.0
        %549 = vmatpush1.msra.mxu0 0.0
        %550 = vmatprep.subr.mxu0 0.0
        %551 = vmatpush1.msra.mxu0 0.0
        %552 = vmatprep.subr.mxu0 0.0
        %553 = vmatpush1.msra.mxu0 0.0
        %554 = vmatprep.subr.mxu0 0.0
        %555 = vmatpush1.msra.mxu0 0.0
        %556 = vmatprep.subr.mxu0 0.0
        %557 = vmatpush1.msra.mxu0 0.0
        %558 = vmatprep.subr.mxu0 0.0
        %559 = vmatpush1.msra.mxu0 0.0
        %560 = vmatprep.subr.mxu0 0.0
        %561 = vmatpush1.msra.mxu0 0.0
        %562 = vmatprep.subr.mxu0 0.0
        %563 = vmatpush1.msra.mxu0 0.0
        %564 = vmatprep.subr.mxu0 0.0
        %565 = vmatpush1.msra.mxu0 0.0
        %566 = vmatprep.subr.mxu0 0.0
        %567 = vmatpush1.msra.mxu0 0.0
        %568 = vmatprep.subr.mxu0 0.0
        %569 = vmatpush1.msra.mxu0 0.0
        %570 = vmatprep.subr.mxu0 0.0
        %571 = vmatpush1.msra.mxu0 0.0
        %572 = vmatprep.subr.mxu0 0.0
        %573 = vmatpush1.msra.mxu0 0.0
        %574 = vmatprep.subr.mxu0 0.0
        %575 = vmatpush1.msra.mxu0 0.0
        %576 = vmatprep.mubr.f32.mxu0 0.0
        %577 = vmatmul.mubr.f32.gmra.mrb[0].mxu0 %v462
        %v578 = vpop.f32.mrb[0].mxu0
        %v579 = vadd.f32 %v383, %v578
        %v580 = vpop.f32.mrb[0].mxu0
        %581 = vmatprep.mubr.f32.mxu0 0.0
        %582 = vmatmul.mubr.f32.gmra.mrb[0].mxu0 %v465
        %v583 = vpop.f32.mrb[0].mxu0
        %v584 = vadd.f32 %v388, %v583
        %v585 = vpop.f32.mrb[0].mxu0
        %586 = vmatprep.mubr.f32.mxu0 0.0
        %587 = vmatmul.mubr.f32.gmra.mrb[0].mxu0 %v468
        %v588 = vpop.f32.mrb[0].mxu0
        %v589 = vadd.f32 %v393, %v588
        %v590 = vpop.f32.mrb[0].mxu0
        %591 = vmatprep.mubr.f32.mxu0 0.0
        %592 = vmatmul.mubr.f32.gmra.mrb[0].mxu0 %v471
        %v593 = vpop.f32.mrb[0].mxu0
        %v594 = vadd.f32 %v398, %v593
        %v595 = vpop.f32.mrb[0].mxu0
        %596 = vmatprep.mubr.f32.mxu0 0.0
        %597 = vmatmul.mubr.f32.gmra.mrb[0].mxu0 %v474
        %v598 = vpop.f32.mrb[0].mxu0
        %v599 = vadd.f32 %v403, %v598
        %v600 = vpop.f32.mrb[0].mxu0
        %601 = vmatprep.mubr.f32.mxu0 0.0
        %602 = vmatmul.mubr.f32.gmra.mrb[0].mxu0 %v477
        %v603 = vpop.f32.mrb[0].mxu0
        %v604 = vadd.f32 %v408, %v603
        %v605 = vpop.f32.mrb[0].mxu0
        %606 = vmatprep.mubr.f32.mxu0 0.0
        %607 = vmatmul.mubr.f32.gmra.mrb[0].mxu0 %v480
        %v608 = vpop.f32.mrb[0].mxu0
        %v609 = vadd.f32 %v413, %v608
        %v610 = vpop.f32.mrb[0].mxu0
        %611 = vmatprep.mubr.f32.mxu0 0.0
        %612 = vmatmul.mubr.f32.gmra.mrb[0].mxu0 %v483
        %v613 = vpop.f32.mrb[0].mxu0
        %v614 = vadd.f32 %v418, %v613
        %v615 = vpop.f32.mrb[0].mxu0
        %616 = vmatprep.mubr.f32.mxu0 0.0
        %617 = vmatmul.mubr.f32.gmra.mrb[0].mxu0 %v486
        %v618 = vpop.f32.mrb[0].mxu0
        %v619 = vadd.f32 %v423, %v618
        %v620 = vpop.f32.mrb[0].mxu0
        %621 = vmatprep.mubr.f32.mxu0 0.0
        %622 = vmatmul.mubr.f32.gmra.mrb[0].mxu0 %v489
        %v623 = vpop.f32.mrb[0].mxu0
        %v624 = vadd.f32 %v428, %v623
        %v625 = vpop.f32.mrb[0].mxu0
        %626 = vmatprep.mubr.f32.mxu0 0.0
        %627 = vmatmul.mubr.f32.gmra.mrb[0].mxu0 %v492
        %v628 = vpop.f32.mrb[0].mxu0
        %v629 = vadd.f32 %v433, %v628
        %v630 = vpop.f32.mrb[0].mxu0
        %631 = vmatprep.mubr.f32.mxu0 0.0
        %632 = vmatmul.mubr.f32.gmra.mrb[0].mxu0 %v495
        %v633 = vpop.f32.mrb[0].mxu0
        %v634 = vadd.f32 %v438, %v633
        %v635 = vpop.f32.mrb[0].mxu0
        %636 = vmatprep.mubr.f32.mxu0 0.0
        %637 = vmatmul.mubr.f32.gmra.mrb[0].mxu0 %v498
        %v638 = vpop.f32.mrb[0].mxu0
        %v639 = vadd.f32 %v443, %v638
        %v640 = vpop.f32.mrb[0].mxu0
        %641 = vmatprep.mubr.f32.mxu0 0.0
        %642 = vmatmul.mubr.f32.gmra.mrb[0].mxu0 %v501
        %v643 = vpop.f32.mrb[0].mxu0
        %v644 = vadd.f32 %v448, %v643
        %v645 = vpop.f32.mrb[0].mxu0
        %646 = vmatprep.mubr.f32.mxu0 0.0
        %647 = vmatmul.mubr.f32.gmra.mrb[0].mxu0 %v504
        %v648 = vpop.f32.mrb[0].mxu0
        %v649 = vadd.f32 %v453, %v648
        %v650 = vpop.f32.mrb[0].mxu0
        %651 = vmatprep.mubr.f32.mxu0 0.0
        %652 = vmatmul.mubr.f32.gmra.mrb[0].mxu0 %v507
        %v653 = vpop.f32.mrb[0].mxu0
        %v654 = vadd.f32 %v458, %v653
        %v655 = vpop.f32.mrb[0].mxu0
        %656 = vdwg.mxu0
        %v657 = vld [vmem:[%s227 + $0x2] sm:$0xff]
        %v658 = vld [vmem:[%s227 + $0xa] sm:$0xff]
        %v659 = vld [vmem:[%s227 + $0x1a] sm:$0xff]
        %v660 = vld [vmem:[%s227 + $0x22] sm:$0xff]
        %v661 = vld [vmem:[%s227 + $0x32] sm:$0xff]
        %v662 = vld [vmem:[%s227 + $0x3a] sm:$0xff]
        %v663 = vld [vmem:[%s227 + $0x4a] sm:$0xff]
        %v664 = vld [vmem:[%s227 + $0x52] sm:$0xff]
        %v665 = vld [vmem:[%s227 + $0x62] sm:$0xff]
        %v666 = vld [vmem:[%s227 + $0x6a] sm:$0xff]
        %v667 = vld [vmem:[%s227 + $0x7a] sm:$0xff]
        %v668 = vld [vmem:[%s227 + $0x82] sm:$0xff]
        %v669 = vld [vmem:[%s227 + $0x92] sm:$0xff]
        %v670 = vld [vmem:[%s227 + $0x9a] sm:$0xff]
        %v671 = vld [vmem:[%s227 + $0xaa] sm:$0xff]
        %v672 = vld [vmem:[%s227 + $0xb2] sm:$0xff]
        %s673 = scalar_lea.vmem %s1, 8
        %v674 = vld [vmem:[%s673] sm:$0xf]
        %v676 = vsel %vm263, %v657, 0
        %v679 = vsel %vm263, %v658, 0
        %v682 = vsel %vm263, %v659, 0
        %v685 = vsel %vm263, %v660, 0
        %v688 = vsel %vm263, %v661, 0
        %v691 = vsel %vm263, %v662, 0
        %v694 = vsel %vm263, %v663, 0
        %v697 = vsel %vm263, %v664, 0
        %v700 = vsel %vm263, %v665, 0
        %v703 = vsel %vm263, %v666, 0
        %v706 = vsel %vm263, %v667, 0
        %v709 = vsel %vm263, %v668, 0
        %v712 = vsel %vm263, %v669, 0
        %v715 = vsel %vm263, %v670, 0
        %v718 = vsel %vm263, %v671, 0
        %v721 = vsel %vm263, %v672, 0
        %v724 = vsel %vm312, %v674, 0
        %726 = vmatprep.subr.mxu0 0.0
        %727 = vmatpush1.msra.mxu0 %v724
        %728 = vmatprep.subr.mxu0 0.0
        %729 = vmatpush1.msra.mxu0 0.0
        %730 = vmatprep.subr.mxu0 0.0
        %731 = vmatpush1.msra.mxu0 0.0
        %732 = vmatprep.subr.mxu0 0.0
        %733 = vmatpush1.msra.mxu0 0.0
        %734 = vmatprep.subr.mxu0 0.0
        %735 = vmatpush1.msra.mxu0 0.0
        %736 = vmatprep.subr.mxu0 0.0
        %737 = vmatpush1.msra.mxu0 0.0
        %738 = vmatprep.subr.mxu0 0.0
        %739 = vmatpush1.msra.mxu0 0.0
        %740 = vmatprep.subr.mxu0 0.0
        %741 = vmatpush1.msra.mxu0 0.0
        %742 = vmatprep.subr.mxu0 0.0
        %743 = vmatpush1.msra.mxu0 0.0
        %744 = vmatprep.subr.mxu0 0.0
        %745 = vmatpush1.msra.mxu0 0.0
        %746 = vmatprep.subr.mxu0 0.0
        %747 = vmatpush1.msra.mxu0 0.0
        %748 = vmatprep.subr.mxu0 0.0
        %749 = vmatpush1.msra.mxu0 0.0
        %750 = vmatprep.subr.mxu0 0.0
        %751 = vmatpush1.msra.mxu0 0.0
        %752 = vmatprep.subr.mxu0 0.0
        %753 = vmatpush1.msra.mxu0 0.0
        %754 = vmatprep.subr.mxu0 0.0
        %755 = vmatpush1.msra.mxu0 0.0
        %756 = vmatprep.subr.mxu0 0.0
        %757 = vmatpush1.msra.mxu0 0.0
        %758 = vmatprep.subr.mxu0 0.0
        %759 = vmatpush1.msra.mxu0 0.0
        %760 = vmatprep.subr.mxu0 0.0
        %761 = vmatpush1.msra.mxu0 0.0
        %762 = vmatprep.subr.mxu0 0.0
        %763 = vmatpush1.msra.mxu0 0.0
        %764 = vmatprep.subr.mxu0 0.0
        %765 = vmatpush1.msra.mxu0 0.0
        %766 = vmatprep.subr.mxu0 0.0
        %767 = vmatpush1.msra.mxu0 0.0
        %768 = vmatprep.subr.mxu0 0.0
        %769 = vmatpush1.msra.mxu0 0.0
        %770 = vmatprep.subr.mxu0 0.0
        %771 = vmatpush1.msra.mxu0 0.0
        %772 = vmatprep.subr.mxu0 0.0
        %773 = vmatpush1.msra.mxu0 0.0
        %774 = vmatprep.subr.mxu0 0.0
        %775 = vmatpush1.msra.mxu0 0.0
        %776 = vmatprep.subr.mxu0 0.0
        %777 = vmatpush1.msra.mxu0 0.0
        %778 = vmatprep.subr.mxu0 0.0
        %779 = vmatpush1.msra.mxu0 0.0
        %780 = vmatprep.subr.mxu0 0.0
        %781 = vmatpush1.msra.mxu0 0.0
        %782 = vmatprep.subr.mxu0 0.0
        %783 = vmatpush1.msra.mxu0 0.0
        %784 = vmatprep.subr.mxu0 0.0
        %785 = vmatpush1.msra.mxu0 0.0
        %786 = vmatprep.subr.mxu0 0.0
        %787 = vmatpush1.msra.mxu0 0.0
        %788 = vmatprep.subr.mxu0 0.0
        %789 = vmatpush1.msra.mxu0 0.0
        %790 = vmatprep.mubr.f32.mxu0 0.0
        %791 = vmatmul.mubr.f32.gmra.mrb[0].mxu0 %v676
        %v792 = vpop.f32.mrb[0].mxu0
        %v793 = vadd.f32 0.0, %v792
        %v794 = vpop.f32.mrb[0].mxu0
        %795 = vmatprep.mubr.f32.mxu0 0.0
        %796 = vmatmul.mubr.f32.gmra.mrb[0].mxu0 %v679
        %v797 = vpop.f32.mrb[0].mxu0
        %v798 = vadd.f32 0.0, %v797
        %v799 = vpop.f32.mrb[0].mxu0
        %800 = vmatprep.mubr.f32.mxu0 0.0
        %801 = vmatmul.mubr.f32.gmra.mrb[0].mxu0 %v682
        %v802 = vpop.f32.mrb[0].mxu0
        %v803 = vadd.f32 0.0, %v802
        %v804 = vpop.f32.mrb[0].mxu0
        %805 = vmatprep.mubr.f32.mxu0 0.0
        %806 = vmatmul.mubr.f32.gmra.mrb[0].mxu0 %v685
        %v807 = vpop.f32.mrb[0].mxu0
        %v808 = vadd.f32 0.0, %v807
        %v809 = vpop.f32.mrb[0].mxu0
        %810 = vmatprep.mubr.f32.mxu0 0.0
        %811 = vmatmul.mubr.f32.gmra.mrb[0].mxu0 %v688
        %v812 = vpop.f32.mrb[0].mxu0
        %v813 = vadd.f32 0.0, %v812
        %v814 = vpop.f32.mrb[0].mxu0
        %815 = vmatprep.mubr.f32.mxu0 0.0
        %816 = vmatmul.mubr.f32.gmra.mrb[0].mxu0 %v691
        %v817 = vpop.f32.mrb[0].mxu0
        %v818 = vadd.f32 0.0, %v817
        %v819 = vpop.f32.mrb[0].mxu0
        %820 = vmatprep.mubr.f32.mxu0 0.0
        %821 = vmatmul.mubr.f32.gmra.mrb[0].mxu0 %v694
        %v822 = vpop.f32.mrb[0].mxu0
        %v823 = vadd.f32 0.0, %v822
        %v824 = vpop.f32.mrb[0].mxu0
        %825 = vmatprep.mubr.f32.mxu0 0.0
        %826 = vmatmul.mubr.f32.gmra.mrb[0].mxu0 %v697
        %v827 = vpop.f32.mrb[0].mxu0
        %v828 = vadd.f32 0.0, %v827
        %v829 = vpop.f32.mrb[0].mxu0
        %830 = vmatprep.mubr.f32.mxu0 0.0
        %831 = vmatmul.mubr.f32.gmra.mrb[0].mxu0 %v700
        %v832 = vpop.f32.mrb[0].mxu0
        %v833 = vadd.f32 0.0, %v832
        %v834 = vpop.f32.mrb[0].mxu0
        %835 = vmatprep.mubr.f32.mxu0 0.0
        %836 = vmatmul.mubr.f32.gmra.mrb[0].mxu0 %v703
        %v837 = vpop.f32.mrb[0].mxu0
        %v838 = vadd.f32 0.0, %v837
        %v839 = vpop.f32.mrb[0].mxu0
        %840 = vmatprep.mubr.f32.mxu0 0.0
        %841 = vmatmul.mubr.f32.gmra.mrb[0].mxu0 %v706
        %v842 = vpop.f32.mrb[0].mxu0
        %v843 = vadd.f32 0.0, %v842
        %v844 = vpop.f32.mrb[0].mxu0
        %845 = vmatprep.mubr.f32.mxu0 0.0
        %846 = vmatmul.mubr.f32.gmra.mrb[0].mxu0 %v709
        %v847 = vpop.f32.mrb[0].mxu0
        %v848 = vadd.f32 0.0, %v847
        %v849 = vpop.f32.mrb[0].mxu0
        %850 = vmatprep.mubr.f32.mxu0 0.0
        %851 = vmatmul.mubr.f32.gmra.mrb[0].mxu0 %v712
        %v852 = vpop.f32.mrb[0].mxu0
        %v853 = vadd.f32 0.0, %v852
        %v854 = vpop.f32.mrb[0].mxu0
        %855 = vmatprep.mubr.f32.mxu0 0.0
        %856 = vmatmul.mubr.f32.gmra.mrb[0].mxu0 %v715
        %v857 = vpop.f32.mrb[0].mxu0
        %v858 = vadd.f32 0.0, %v857
        %v859 = vpop.f32.mrb[0].mxu0
        %860 = vmatprep.mubr.f32.mxu0 0.0
        %861 = vmatmul.mubr.f32.gmra.mrb[0].mxu0 %v718
        %v862 = vpop.f32.mrb[0].mxu0
        %v863 = vadd.f32 0.0, %v862
        %v864 = vpop.f32.mrb[0].mxu0
        %865 = vmatprep.mubr.f32.mxu0 0.0
        %866 = vmatmul.mubr.f32.gmra.mrb[0].mxu0 %v721
        %v867 = vpop.f32.mrb[0].mxu0
        %v868 = vadd.f32 0.0, %v867
        %v869 = vpop.f32.mrb[0].mxu0
        %870 = vdwg.mxu0
        %v871 = vadd.f32 %v579, %v793
        %v872 = vadd.f32 %v584, %v798
        %v873 = vadd.f32 %v589, %v803
        %v874 = vadd.f32 %v594, %v808
        %v875 = vadd.f32 %v599, %v813
        %v876 = vadd.f32 %v604, %v818
        %v877 = vadd.f32 %v609, %v823
        %v878 = vadd.f32 %v614, %v828
        %v879 = vadd.f32 %v619, %v833
        %v880 = vadd.f32 %v624, %v838
        %v881 = vadd.f32 %v629, %v843
        %v882 = vadd.f32 %v634, %v848
        %v883 = vadd.f32 %v639, %v853
        %v884 = vadd.f32 %v644, %v858
        %v885 = vadd.f32 %v649, %v863
        %v886 = vadd.f32 %v654, %v868
        %s887 = sadd.s32 %s225, 1
        %s888 = smul.u32 %s887, 24
        %s889 = scalar_lea.vmem %s222, %s888
        %v890 = vld [vmem:[%s889] sm:$0xff]
        %v891 = vld [vmem:[%s889 + $0x8] sm:$0xff]
        %v892 = vld [vmem:[%s889 + $0x18] sm:$0xff]
        %v893 = vld [vmem:[%s889 + $0x20] sm:$0xff]
        %v894 = vld [vmem:[%s889 + $0x30] sm:$0xff]
        %v895 = vld [vmem:[%s889 + $0x38] sm:$0xff]
        %v896 = vld [vmem:[%s889 + $0x48] sm:$0xff]
        %v897 = vld [vmem:[%s889 + $0x50] sm:$0xff]
        %v898 = vld [vmem:[%s889 + $0x60] sm:$0xff]
        %v899 = vld [vmem:[%s889 + $0x68] sm:$0xff]
        %v900 = vld [vmem:[%s889 + $0x78] sm:$0xff]
        %v901 = vld [vmem:[%s889 + $0x80] sm:$0xff]
        %v902 = vld [vmem:[%s889 + $0x90] sm:$0xff]
        %v903 = vld [vmem:[%s889 + $0x98] sm:$0xff]
        %v904 = vld [vmem:[%s889 + $0xa8] sm:$0xff]
        %v905 = vld [vmem:[%s889 + $0xb0] sm:$0xff]
        %s906 = scalar_lea.vmem %s1, 12
        %v907 = vld [vmem:[%s906] sm:$0xf]
        %v909 = vsel %vm263, %v890, 0
        %v912 = vsel %vm263, %v891, 0
        %v915 = vsel %vm263, %v892, 0
        %v918 = vsel %vm263, %v893, 0
        %v921 = vsel %vm263, %v894, 0
        %v924 = vsel %vm263, %v895, 0
        %v927 = vsel %vm263, %v896, 0
        %v930 = vsel %vm263, %v897, 0
        %v933 = vsel %vm263, %v898, 0
        %v936 = vsel %vm263, %v899, 0
        %v939 = vsel %vm263, %v900, 0
        %v942 = vsel %vm263, %v901, 0
        %v945 = vsel %vm263, %v902, 0
        %v948 = vsel %vm263, %v903, 0
        %v951 = vsel %vm263, %v904, 0
        %v954 = vsel %vm263, %v905, 0
        %v957 = vsel %vm312, %v907, 0
        %959 = vmatprep.subr.mxu0 0.0
        %960 = vmatpush1.msra.mxu0 %v957
        %961 = vmatprep.subr.mxu0 0.0
        %962 = vmatpush1.msra.mxu0 0.0
        %963 = vmatprep.subr.mxu0 0.0
        %964 = vmatpush1.msra.mxu0 0.0
        %965 = vmatprep.subr.mxu0 0.0
        %966 = vmatpush1.msra.mxu0 0.0
        %967 = vmatprep.subr.mxu0 0.0
        %968 = vmatpush1.msra.mxu0 0.0
        %969 = vmatprep.subr.mxu0 0.0
        %970 = vmatpush1.msra.mxu0 0.0
        %971 = vmatprep.subr.mxu0 0.0
        %972 = vmatpush1.msra.mxu0 0.0
        %973 = vmatprep.subr.mxu0 0.0
        %974 = vmatpush1.msra.mxu0 0.0
        %975 = vmatprep.subr.mxu0 0.0
        %976 = vmatpush1.msra.mxu0 0.0
        %977 = vmatprep.subr.mxu0 0.0
        %978 = vmatpush1.msra.mxu0 0.0
        %979 = vmatprep.subr.mxu0 0.0
        %980 = vmatpush1.msra.mxu0 0.0
        %981 = vmatprep.subr.mxu0 0.0
        %982 = vmatpush1.msra.mxu0 0.0
        %983 = vmatprep.subr.mxu0 0.0
        %984 = vmatpush1.msra.mxu0 0.0
        %985 = vmatprep.subr.mxu0 0.0
        %986 = vmatpush1.msra.mxu0 0.0
        %987 = vmatprep.subr.mxu0 0.0
        %988 = vmatpush1.msra.mxu0 0.0
        %989 = vmatprep.subr.mxu0 0.0
        %990 = vmatpush1.msra.mxu0 0.0
        %991 = vmatprep.subr.mxu0 0.0
        %992 = vmatpush1.msra.mxu0 0.0
        %993 = vmatprep.subr.mxu0 0.0
        %994 = vmatpush1.msra.mxu0 0.0
        %995 = vmatprep.subr.mxu0 0.0
        %996 = vmatpush1.msra.mxu0 0.0
        %997 = vmatprep.subr.mxu0 0.0
        %998 = vmatpush1.msra.mxu0 0.0
        %999 = vmatprep.subr.mxu0 0.0
        %1000 = vmatpush1.msra.mxu0 0.0
        %1001 = vmatprep.subr.mxu0 0.0
        %1002 = vmatpush1.msra.mxu0 0.0
        %1003 = vmatprep.subr.mxu0 0.0
        %1004 = vmatpush1.msra.mxu0 0.0
        %1005 = vmatprep.subr.mxu0 0.0
        %1006 = vmatpush1.msra.mxu0 0.0
        %1007 = vmatprep.subr.mxu0 0.0
        %1008 = vmatpush1.msra.mxu0 0.0
        %1009 = vmatprep.subr.mxu0 0.0
        %1010 = vmatpush1.msra.mxu0 0.0
        %1011 = vmatprep.subr.mxu0 0.0
        %1012 = vmatpush1.msra.mxu0 0.0
        %1013 = vmatprep.subr.mxu0 0.0
        %1014 = vmatpush1.msra.mxu0 0.0
        %1015 = vmatprep.subr.mxu0 0.0
        %1016 = vmatpush1.msra.mxu0 0.0
        %1017 = vmatprep.subr.mxu0 0.0
        %1018 = vmatpush1.msra.mxu0 0.0
        %1019 = vmatprep.subr.mxu0 0.0
        %1020 = vmatpush1.msra.mxu0 0.0
        %1021 = vmatprep.subr.mxu0 0.0
        %1022 = vmatpush1.msra.mxu0 0.0
        %1023 = vmatprep.mubr.f32.mxu0 0.0
        %1024 = vmatmul.mubr.f32.gmra.mrb[0].mxu0 %v909
        %v1025 = vpop.f32.mrb[0].mxu0
        %v1026 = vadd.f32 0.0, %v1025
        %v1027 = vpop.f32.mrb[0].mxu0
        %1028 = vmatprep.mubr.f32.mxu0 0.0
        %1029 = vmatmul.mubr.f32.gmra.mrb[0].mxu0 %v912
        %v1030 = vpop.f32.mrb[0].mxu0
        %v1031 = vadd.f32 0.0, %v1030
        %v1032 = vpop.f32.mrb[0].mxu0
        %1033 = vmatprep.mubr.f32.mxu0 0.0
        %1034 = vmatmul.mubr.f32.gmra.mrb[0].mxu0 %v915
        %v1035 = vpop.f32.mrb[0].mxu0
        %v1036 = vadd.f32 0.0, %v1035
        %v1037 = vpop.f32.mrb[0].mxu0
        %1038 = vmatprep.mubr.f32.mxu0 0.0
        %1039 = vmatmul.mubr.f32.gmra.mrb[0].mxu0 %v918
        %v1040 = vpop.f32.mrb[0].mxu0
        %v1041 = vadd.f32 0.0, %v1040
        %v1042 = vpop.f32.mrb[0].mxu0
        %1043 = vmatprep.mubr.f32.mxu0 0.0
        %1044 = vmatmul.mubr.f32.gmra.mrb[0].mxu0 %v921
        %v1045 = vpop.f32.mrb[0].mxu0
        %v1046 = vadd.f32 0.0, %v1045
        %v1047 = vpop.f32.mrb[0].mxu0
        %1048 = vmatprep.mubr.f32.mxu0 0.0
        %1049 = vmatmul.mubr.f32.gmra.mrb[0].mxu0 %v924
        %v1050 = vpop.f32.mrb[0].mxu0
        %v1051 = vadd.f32 0.0, %v1050
        %v1052 = vpop.f32.mrb[0].mxu0
        %1053 = vmatprep.mubr.f32.mxu0 0.0
        %1054 = vmatmul.mubr.f32.gmra.mrb[0].mxu0 %v927
        %v1055 = vpop.f32.mrb[0].mxu0
        %v1056 = vadd.f32 0.0, %v1055
        %v1057 = vpop.f32.mrb[0].mxu0
        %1058 = vmatprep.mubr.f32.mxu0 0.0
        %1059 = vmatmul.mubr.f32.gmra.mrb[0].mxu0 %v930
        %v1060 = vpop.f32.mrb[0].mxu0
        %v1061 = vadd.f32 0.0, %v1060
        %v1062 = vpop.f32.mrb[0].mxu0
        %1063 = vmatprep.mubr.f32.mxu0 0.0
        %1064 = vmatmul.mubr.f32.gmra.mrb[0].mxu0 %v933
        %v1065 = vpop.f32.mrb[0].mxu0
        %v1066 = vadd.f32 0.0, %v1065
        %v1067 = vpop.f32.mrb[0].mxu0
        %1068 = vmatprep.mubr.f32.mxu0 0.0
        %1069 = vmatmul.mubr.f32.gmra.mrb[0].mxu0 %v936
        %v1070 = vpop.f32.mrb[0].mxu0
        %v1071 = vadd.f32 0.0, %v1070
        %v1072 = vpop.f32.mrb[0].mxu0
        %1073 = vmatprep.mubr.f32.mxu0 0.0
        %1074 = vmatmul.mubr.f32.gmra.mrb[0].mxu0 %v939
        %v1075 = vpop.f32.mrb[0].mxu0
        %v1076 = vadd.f32 0.0, %v1075
        %v1077 = vpop.f32.mrb[0].mxu0
        %1078 = vmatprep.mubr.f32.mxu0 0.0
        %1079 = vmatmul.mubr.f32.gmra.mrb[0].mxu0 %v942
        %v1080 = vpop.f32.mrb[0].mxu0
        %v1081 = vadd.f32 0.0, %v1080
        %v1082 = vpop.f32.mrb[0].mxu0
        %1083 = vmatprep.mubr.f32.mxu0 0.0
        %1084 = vmatmul.mubr.f32.gmra.mrb[0].mxu0 %v945
        %v1085 = vpop.f32.mrb[0].mxu0
        %v1086 = vadd.f32 0.0, %v1085
        %v1087 = vpop.f32.mrb[0].mxu0
        %1088 = vmatprep.mubr.f32.mxu0 0.0
        %1089 = vmatmul.mubr.f32.gmra.mrb[0].mxu0 %v948
        %v1090 = vpop.f32.mrb[0].mxu0
        %v1091 = vadd.f32 0.0, %v1090
        %v1092 = vpop.f32.mrb[0].mxu0
        %1093 = vmatprep.mubr.f32.mxu0 0.0
        %1094 = vmatmul.mubr.f32.gmra.mrb[0].mxu0 %v951
        %v1095 = vpop.f32.mrb[0].mxu0
        %v1096 = vadd.f32 0.0, %v1095
        %v1097 = vpop.f32.mrb[0].mxu0
        %1098 = vmatprep.mubr.f32.mxu0 0.0
        %1099 = vmatmul.mubr.f32.gmra.mrb[0].mxu0 %v954
        %v1100 = vpop.f32.mrb[0].mxu0
        %v1101 = vadd.f32 0.0, %v1100
        %v1102 = vpop.f32.mrb[0].mxu0
        %1103 = vdwg.mxu0
        %v1104 = vadd.f32 %v871, %v1026
        %v1105 = vadd.f32 %v872, %v1031
        %v1106 = vadd.f32 %v873, %v1036
        %v1107 = vadd.f32 %v874, %v1041
        %v1108 = vadd.f32 %v875, %v1046
        %v1109 = vadd.f32 %v876, %v1051
        %v1110 = vadd.f32 %v877, %v1056
        %v1111 = vadd.f32 %v878, %v1061
        %v1112 = vadd.f32 %v879, %v1066
        %v1113 = vadd.f32 %v880, %v1071
        %v1114 = vadd.f32 %v881, %v1076
        %v1115 = vadd.f32 %v882, %v1081
        %v1116 = vadd.f32 %v883, %v1086
        %v1117 = vadd.f32 %v884, %v1091
        %v1118 = vadd.f32 %v885, %v1096
        %v1119 = vadd.f32 %v886, %v1101
        %v1120 = vld [vmem:[%s889 + $0x1] sm:$0xff]
        %v1121 = vld [vmem:[%s889 + $0x9] sm:$0xff]
        %v1122 = vld [vmem:[%s889 + $0x19] sm:$0xff]
        %v1123 = vld [vmem:[%s889 + $0x21] sm:$0xff]
        %v1124 = vld [vmem:[%s889 + $0x31] sm:$0xff]
        %v1125 = vld [vmem:[%s889 + $0x39] sm:$0xff]
        %v1126 = vld [vmem:[%s889 + $0x49] sm:$0xff]
        %v1127 = vld [vmem:[%s889 + $0x51] sm:$0xff]
        %v1128 = vld [vmem:[%s889 + $0x61] sm:$0xff]
        %v1129 = vld [vmem:[%s889 + $0x69] sm:$0xff]
        %v1130 = vld [vmem:[%s889 + $0x79] sm:$0xff]
        %v1131 = vld [vmem:[%s889 + $0x81] sm:$0xff]
        %v1132 = vld [vmem:[%s889 + $0x91] sm:$0xff]
        %v1133 = vld [vmem:[%s889 + $0x99] sm:$0xff]
        %v1134 = vld [vmem:[%s889 + $0xa9] sm:$0xff]
        %v1135 = vld [vmem:[%s889 + $0xb1] sm:$0xff]
        %s1136 = scalar_lea.vmem %s1, 16
        %v1137 = vld [vmem:[%s1136] sm:$0xf]
        %v1139 = vsel %vm263, %v1120, 0
        %v1142 = vsel %vm263, %v1121, 0
        %v1145 = vsel %vm263, %v1122, 0
        %v1148 = vsel %vm263, %v1123, 0
        %v1151 = vsel %vm263, %v1124, 0
        %v1154 = vsel %vm263, %v1125, 0
        %v1157 = vsel %vm263, %v1126, 0
        %v1160 = vsel %vm263, %v1127, 0
        %v1163 = vsel %vm263, %v1128, 0
        %v1166 = vsel %vm263, %v1129, 0
        %v1169 = vsel %vm263, %v1130, 0
        %v1172 = vsel %vm263, %v1131, 0
        %v1175 = vsel %vm263, %v1132, 0
        %v1178 = vsel %vm263, %v1133, 0
        %v1181 = vsel %vm263, %v1134, 0
        %v1184 = vsel %vm263, %v1135, 0
        %v1187 = vsel %vm312, %v1137, 0
        %1189 = vmatprep.subr.mxu0 0.0
        %1190 = vmatpush1.msra.mxu0 %v1187
        %1191 = vmatprep.subr.mxu0 0.0
        %1192 = vmatpush1.msra.mxu0 0.0
        %1193 = vmatprep.subr.mxu0 0.0
        %1194 = vmatpush1.msra.mxu0 0.0
        %1195 = vmatprep.subr.mxu0 0.0
        %1196 = vmatpush1.msra.mxu0 0.0
        %1197 = vmatprep.subr.mxu0 0.0
        %1198 = vmatpush1.msra.mxu0 0.0
        %1199 = vmatprep.subr.mxu0 0.0
        %1200 = vmatpush1.msra.mxu0 0.0
        %1201 = vmatprep.subr.mxu0 0.0
        %1202 = vmatpush1.msra.mxu0 0.0
        %1203 = vmatprep.subr.mxu0 0.0
        %1204 = vmatpush1.msra.mxu0 0.0
        %1205 = vmatprep.subr.mxu0 0.0
        %1206 = vmatpush1.msra.mxu0 0.0
        %1207 = vmatprep.subr.mxu0 0.0
        %1208 = vmatpush1.msra.mxu0 0.0
        %1209 = vmatprep.subr.mxu0 0.0
        %1210 = vmatpush1.msra.mxu0 0.0
        %1211 = vmatprep.subr.mxu0 0.0
        %1212 = vmatpush1.msra.mxu0 0.0
        %1213 = vmatprep.subr.mxu0 0.0
        %1214 = vmatpush1.msra.mxu0 0.0
        %1215 = vmatprep.subr.mxu0 0.0
        %1216 = vmatpush1.msra.mxu0 0.0
        %1217 = vmatprep.subr.mxu0 0.0
        %1218 = vmatpush1.msra.mxu0 0.0
        %1219 = vmatprep.subr.mxu0 0.0
        %1220 = vmatpush1.msra.mxu0 0.0
        %1221 = vmatprep.subr.mxu0 0.0
        %1222 = vmatpush1.msra.mxu0 0.0
        %1223 = vmatprep.subr.mxu0 0.0
        %1224 = vmatpush1.msra.mxu0 0.0
        %1225 = vmatprep.subr.mxu0 0.0
        %1226 = vmatpush1.msra.mxu0 0.0
        %1227 = vmatprep.subr.mxu0 0.0
        %1228 = vmatpush1.msra.mxu0 0.0
        %1229 = vmatprep.subr.mxu0 0.0
        %1230 = vmatpush1.msra.mxu0 0.0
        %1231 = vmatprep.subr.mxu0 0.0
        %1232 = vmatpush1.msra.mxu0 0.0
        %1233 = vmatprep.subr.mxu0 0.0
        %1234 = vmatpush1.msra.mxu0 0.0
        %1235 = vmatprep.subr.mxu0 0.0
        %1236 = vmatpush1.msra.mxu0 0.0
        %1237 = vmatprep.subr.mxu0 0.0
        %1238 = vmatpush1.msra.mxu0 0.0
        %1239 = vmatprep.subr.mxu0 0.0
        %1240 = vmatpush1.msra.mxu0 0.0
        %1241 = vmatprep.subr.mxu0 0.0
        %1242 = vmatpush1.msra.mxu0 0.0
        %1243 = vmatprep.subr.mxu0 0.0
        %1244 = vmatpush1.msra.mxu0 0.0
        %1245 = vmatprep.subr.mxu0 0.0
        %1246 = vmatpush1.msra.mxu0 0.0
        %1247 = vmatprep.subr.mxu0 0.0
        %1248 = vmatpush1.msra.mxu0 0.0
        %1249 = vmatprep.subr.mxu0 0.0
        %1250 = vmatpush1.msra.mxu0 0.0
        %1251 = vmatprep.subr.mxu0 0.0
        %1252 = vmatpush1.msra.mxu0 0.0
        %1253 = vmatprep.mubr.f32.mxu0 0.0
        %1254 = vmatmul.mubr.f32.gmra.mrb[0].mxu0 %v1139
        %v1255 = vpop.f32.mrb[0].mxu0
        %v1256 = vadd.f32 0.0, %v1255
        %v1257 = vpop.f32.mrb[0].mxu0
        %1258 = vmatprep.mubr.f32.mxu0 0.0
        %1259 = vmatmul.mubr.f32.gmra.mrb[0].mxu0 %v1142
        %v1260 = vpop.f32.mrb[0].mxu0
        %v1261 = vadd.f32 0.0, %v1260
        %v1262 = vpop.f32.mrb[0].mxu0
        %1263 = vmatprep.mubr.f32.mxu0 0.0
        %1264 = vmatmul.mubr.f32.gmra.mrb[0].mxu0 %v1145
        %v1265 = vpop.f32.mrb[0].mxu0
        %v1266 = vadd.f32 0.0, %v1265
        %v1267 = vpop.f32.mrb[0].mxu0
        %1268 = vmatprep.mubr.f32.mxu0 0.0
        %1269 = vmatmul.mubr.f32.gmra.mrb[0].mxu0 %v1148
        %v1270 = vpop.f32.mrb[0].mxu0
        %v1271 = vadd.f32 0.0, %v1270
        %v1272 = vpop.f32.mrb[0].mxu0
        %1273 = vmatprep.mubr.f32.mxu0 0.0
        %1274 = vmatmul.mubr.f32.gmra.mrb[0].mxu0 %v1151
        %v1275 = vpop.f32.mrb[0].mxu0
        %v1276 = vadd.f32 0.0, %v1275
        %v1277 = vpop.f32.mrb[0].mxu0
        %1278 = vmatprep.mubr.f32.mxu0 0.0
        %1279 = vmatmul.mubr.f32.gmra.mrb[0].mxu0 %v1154
        %v1280 = vpop.f32.mrb[0].mxu0
        %v1281 = vadd.f32 0.0, %v1280
        %v1282 = vpop.f32.mrb[0].mxu0
        %1283 = vmatprep.mubr.f32.mxu0 0.0
        %1284 = vmatmul.mubr.f32.gmra.mrb[0].mxu0 %v1157
        %v1285 = vpop.f32.mrb[0].mxu0
        %v1286 = vadd.f32 0.0, %v1285
        %v1287 = vpop.f32.mrb[0].mxu0
        %1288 = vmatprep.mubr.f32.mxu0 0.0
        %1289 = vmatmul.mubr.f32.gmra.mrb[0].mxu0 %v1160
        %v1290 = vpop.f32.mrb[0].mxu0
        %v1291 = vadd.f32 0.0, %v1290
        %v1292 = vpop.f32.mrb[0].mxu0
        %1293 = vmatprep.mubr.f32.mxu0 0.0
        %1294 = vmatmul.mubr.f32.gmra.mrb[0].mxu0 %v1163
        %v1295 = vpop.f32.mrb[0].mxu0
        %v1296 = vadd.f32 0.0, %v1295
        %v1297 = vpop.f32.mrb[0].mxu0
        %1298 = vmatprep.mubr.f32.mxu0 0.0
        %1299 = vmatmul.mubr.f32.gmra.mrb[0].mxu0 %v1166
        %v1300 = vpop.f32.mrb[0].mxu0
        %v1301 = vadd.f32 0.0, %v1300
        %v1302 = vpop.f32.mrb[0].mxu0
        %1303 = vmatprep.mubr.f32.mxu0 0.0
        %1304 = vmatmul.mubr.f32.gmra.mrb[0].mxu0 %v1169
        %v1305 = vpop.f32.mrb[0].mxu0
        %v1306 = vadd.f32 0.0, %v1305
        %v1307 = vpop.f32.mrb[0].mxu0
        %1308 = vmatprep.mubr.f32.mxu0 0.0
        %1309 = vmatmul.mubr.f32.gmra.mrb[0].mxu0 %v1172
        %v1310 = vpop.f32.mrb[0].mxu0
        %v1311 = vadd.f32 0.0, %v1310
        %v1312 = vpop.f32.mrb[0].mxu0
        %1313 = vmatprep.mubr.f32.mxu0 0.0
        %1314 = vmatmul.mubr.f32.gmra.mrb[0].mxu0 %v1175
        %v1315 = vpop.f32.mrb[0].mxu0
        %v1316 = vadd.f32 0.0, %v1315
        %v1317 = vpop.f32.mrb[0].mxu0
        %1318 = vmatprep.mubr.f32.mxu0 0.0
        %1319 = vmatmul.mubr.f32.gmra.mrb[0].mxu0 %v1178
        %v1320 = vpop.f32.mrb[0].mxu0
        %v1321 = vadd.f32 0.0, %v1320
        %v1322 = vpop.f32.mrb[0].mxu0
        %1323 = vmatprep.mubr.f32.mxu0 0.0
        %1324 = vmatmul.mubr.f32.gmra.mrb[0].mxu0 %v1181
        %v1325 = vpop.f32.mrb[0].mxu0
        %v1326 = vadd.f32 0.0, %v1325
        %v1327 = vpop.f32.mrb[0].mxu0
        %1328 = vmatprep.mubr.f32.mxu0 0.0
        %1329 = vmatmul.mubr.f32.gmra.mrb[0].mxu0 %v1184
        %v1330 = vpop.f32.mrb[0].mxu0
        %v1331 = vadd.f32 0.0, %v1330
        %v1332 = vpop.f32.mrb[0].mxu0
        %1333 = vdwg.mxu0
        %v1334 = vadd.f32 %v1104, %v1256
        %v1335 = vadd.f32 %v1105, %v1261
        %v1336 = vadd.f32 %v1106, %v1266
        %v1337 = vadd.f32 %v1107, %v1271
        %v1338 = vadd.f32 %v1108, %v1276
        %v1339 = vadd.f32 %v1109, %v1281
        %v1340 = vadd.f32 %v1110, %v1286
        %v1341 = vadd.f32 %v1111, %v1291
        %v1342 = vadd.f32 %v1112, %v1296
        %v1343 = vadd.f32 %v1113, %v1301
        %v1344 = vadd.f32 %v1114, %v1306
        %v1345 = vadd.f32 %v1115, %v1311
        %v1346 = vadd.f32 %v1116, %v1316
        %v1347 = vadd.f32 %v1117, %v1321
        %v1348 = vadd.f32 %v1118, %v1326
        %v1349 = vadd.f32 %v1119, %v1331
        %v1350 = vld [vmem:[%s889 + $0x2] sm:$0xff]
        %v1351 = vld [vmem:[%s889 + $0xa] sm:$0xff]
        %v1352 = vld [vmem:[%s889 + $0x1a] sm:$0xff]
        %v1353 = vld [vmem:[%s889 + $0x22] sm:$0xff]
        %v1354 = vld [vmem:[%s889 + $0x32] sm:$0xff]
        %v1355 = vld [vmem:[%s889 + $0x3a] sm:$0xff]
        %v1356 = vld [vmem:[%s889 + $0x4a] sm:$0xff]
        %v1357 = vld [vmem:[%s889 + $0x52] sm:$0xff]
        %v1358 = vld [vmem:[%s889 + $0x62] sm:$0xff]
        %v1359 = vld [vmem:[%s889 + $0x6a] sm:$0xff]
        %v1360 = vld [vmem:[%s889 + $0x7a] sm:$0xff]
        %v1361 = vld [vmem:[%s889 + $0x82] sm:$0xff]
        %v1362 = vld [vmem:[%s889 + $0x92] sm:$0xff]
        %v1363 = vld [vmem:[%s889 + $0x9a] sm:$0xff]
        %v1364 = vld [vmem:[%s889 + $0xaa] sm:$0xff]
        %v1365 = vld [vmem:[%s889 + $0xb2] sm:$0xff]
        %s1366 = scalar_lea.vmem %s1, 20
        %v1367 = vld [vmem:[%s1366] sm:$0xf]
        %v1369 = vsel %vm263, %v1350, 0
        %v1372 = vsel %vm263, %v1351, 0
        %v1375 = vsel %vm263, %v1352, 0
        %v1378 = vsel %vm263, %v1353, 0
        %v1381 = vsel %vm263, %v1354, 0
        %v1384 = vsel %vm263, %v1355, 0
        %v1387 = vsel %vm263, %v1356, 0
        %v1390 = vsel %vm263, %v1357, 0
        %v1393 = vsel %vm263, %v1358, 0
        %v1396 = vsel %vm263, %v1359, 0
        %v1399 = vsel %vm263, %v1360, 0
        %v1402 = vsel %vm263, %v1361, 0
        %v1405 = vsel %vm263, %v1362, 0
        %v1408 = vsel %vm263, %v1363, 0
        %v1411 = vsel %vm263, %v1364, 0
        %v1414 = vsel %vm263, %v1365, 0
        %v1417 = vsel %vm312, %v1367, 0
        %1419 = vmatprep.subr.mxu0 0.0
        %1420 = vmatpush1.msra.mxu0 %v1417
        %1421 = vmatprep.subr.mxu0 0.0
        %1422 = vmatpush1.msra.mxu0 0.0
        %1423 = vmatprep.subr.mxu0 0.0
        %1424 = vmatpush1.msra.mxu0 0.0
        %1425 = vmatprep.subr.mxu0 0.0
        %1426 = vmatpush1.msra.mxu0 0.0
        %1427 = vmatprep.subr.mxu0 0.0
        %1428 = vmatpush1.msra.mxu0 0.0
        %1429 = vmatprep.subr.mxu0 0.0
        %1430 = vmatpush1.msra.mxu0 0.0
        %1431 = vmatprep.subr.mxu0 0.0
        %1432 = vmatpush1.msra.mxu0 0.0
        %1433 = vmatprep.subr.mxu0 0.0
        %1434 = vmatpush1.msra.mxu0 0.0
        %1435 = vmatprep.subr.mxu0 0.0
        %1436 = vmatpush1.msra.mxu0 0.0
        %1437 = vmatprep.subr.mxu0 0.0
        %1438 = vmatpush1.msra.mxu0 0.0
        %1439 = vmatprep.subr.mxu0 0.0
        %1440 = vmatpush1.msra.mxu0 0.0
        %1441 = vmatprep.subr.mxu0 0.0
        %1442 = vmatpush1.msra.mxu0 0.0
        %1443 = vmatprep.subr.mxu0 0.0
        %1444 = vmatpush1.msra.mxu0 0.0
        %1445 = vmatprep.subr.mxu0 0.0
        %1446 = vmatpush1.msra.mxu0 0.0
        %1447 = vmatprep.subr.mxu0 0.0
        %1448 = vmatpush1.msra.mxu0 0.0
        %1449 = vmatprep.subr.mxu0 0.0
        %1450 = vmatpush1.msra.mxu0 0.0
        %1451 = vmatprep.subr.mxu0 0.0
        %1452 = vmatpush1.msra.mxu0 0.0
        %1453 = vmatprep.subr.mxu0 0.0
        %1454 = vmatpush1.msra.mxu0 0.0
        %1455 = vmatprep.subr.mxu0 0.0
        %1456 = vmatpush1.msra.mxu0 0.0
        %1457 = vmatprep.subr.mxu0 0.0
        %1458 = vmatpush1.msra.mxu0 0.0
        %1459 = vmatprep.subr.mxu0 0.0
        %1460 = vmatpush1.msra.mxu0 0.0
        %1461 = vmatprep.subr.mxu0 0.0
        %1462 = vmatpush1.msra.mxu0 0.0
        %1463 = vmatprep.subr.mxu0 0.0
        %1464 = vmatpush1.msra.mxu0 0.0
        %1465 = vmatprep.subr.mxu0 0.0
        %1466 = vmatpush1.msra.mxu0 0.0
        %1467 = vmatprep.subr.mxu0 0.0
        %1468 = vmatpush1.msra.mxu0 0.0
        %1469 = vmatprep.subr.mxu0 0.0
        %1470 = vmatpush1.msra.mxu0 0.0
        %1471 = vmatprep.subr.mxu0 0.0
        %1472 = vmatpush1.msra.mxu0 0.0
        %1473 = vmatprep.subr.mxu0 0.0
        %1474 = vmatpush1.msra.mxu0 0.0
        %1475 = vmatprep.subr.mxu0 0.0
        %1476 = vmatpush1.msra.mxu0 0.0
        %1477 = vmatprep.subr.mxu0 0.0
        %1478 = vmatpush1.msra.mxu0 0.0
        %1479 = vmatprep.subr.mxu0 0.0
        %1480 = vmatpush1.msra.mxu0 0.0
        %1481 = vmatprep.subr.mxu0 0.0
        %1482 = vmatpush1.msra.mxu0 0.0
        %1483 = vmatprep.mubr.f32.mxu0 0.0
        %1484 = vmatmul.mubr.f32.gmra.mrb[0].mxu0 %v1369
        %v1485 = vpop.f32.mrb[0].mxu0
        %v1486 = vadd.f32 0.0, %v1485
        %v1487 = vpop.f32.mrb[0].mxu0
        %1488 = vmatprep.mubr.f32.mxu0 0.0
        %1489 = vmatmul.mubr.f32.gmra.mrb[0].mxu0 %v1372
        %v1490 = vpop.f32.mrb[0].mxu0
        %v1491 = vadd.f32 0.0, %v1490
        %v1492 = vpop.f32.mrb[0].mxu0
        %1493 = vmatprep.mubr.f32.mxu0 0.0
        %1494 = vmatmul.mubr.f32.gmra.mrb[0].mxu0 %v1375
        %v1495 = vpop.f32.mrb[0].mxu0
        %v1496 = vadd.f32 0.0, %v1495
        %v1497 = vpop.f32.mrb[0].mxu0
        %1498 = vmatprep.mubr.f32.mxu0 0.0
        %1499 = vmatmul.mubr.f32.gmra.mrb[0].mxu0 %v1378
        %v1500 = vpop.f32.mrb[0].mxu0
        %v1501 = vadd.f32 0.0, %v1500
        %v1502 = vpop.f32.mrb[0].mxu0
        %1503 = vmatprep.mubr.f32.mxu0 0.0
        %1504 = vmatmul.mubr.f32.gmra.mrb[0].mxu0 %v1381
        %v1505 = vpop.f32.mrb[0].mxu0
        %v1506 = vadd.f32 0.0, %v1505
        %v1507 = vpop.f32.mrb[0].mxu0
        %1508 = vmatprep.mubr.f32.mxu0 0.0
        %1509 = vmatmul.mubr.f32.gmra.mrb[0].mxu0 %v1384
        %v1510 = vpop.f32.mrb[0].mxu0
        %v1511 = vadd.f32 0.0, %v1510
        %v1512 = vpop.f32.mrb[0].mxu0
        %1513 = vmatprep.mubr.f32.mxu0 0.0
        %1514 = vmatmul.mubr.f32.gmra.mrb[0].mxu0 %v1387
        %v1515 = vpop.f32.mrb[0].mxu0
        %v1516 = vadd.f32 0.0, %v1515
        %v1517 = vpop.f32.mrb[0].mxu0
        %1518 = vmatprep.mubr.f32.mxu0 0.0
        %1519 = vmatmul.mubr.f32.gmra.mrb[0].mxu0 %v1390
        %v1520 = vpop.f32.mrb[0].mxu0
        %v1521 = vadd.f32 0.0, %v1520
        %v1522 = vpop.f32.mrb[0].mxu0
        %1523 = vmatprep.mubr.f32.mxu0 0.0
        %1524 = vmatmul.mubr.f32.gmra.mrb[0].mxu0 %v1393
        %v1525 = vpop.f32.mrb[0].mxu0
        %v1526 = vadd.f32 0.0, %v1525
        %v1527 = vpop.f32.mrb[0].mxu0
        %1528 = vmatprep.mubr.f32.mxu0 0.0
        %1529 = vmatmul.mubr.f32.gmra.mrb[0].mxu0 %v1396
        %v1530 = vpop.f32.mrb[0].mxu0
        %v1531 = vadd.f32 0.0, %v1530
        %v1532 = vpop.f32.mrb[0].mxu0
        %1533 = vmatprep.mubr.f32.mxu0 0.0
        %1534 = vmatmul.mubr.f32.gmra.mrb[0].mxu0 %v1399
        %v1535 = vpop.f32.mrb[0].mxu0
        %v1536 = vadd.f32 0.0, %v1535
        %v1537 = vpop.f32.mrb[0].mxu0
        %1538 = vmatprep.mubr.f32.mxu0 0.0
        %1539 = vmatmul.mubr.f32.gmra.mrb[0].mxu0 %v1402
        %v1540 = vpop.f32.mrb[0].mxu0
        %v1541 = vadd.f32 0.0, %v1540
        %v1542 = vpop.f32.mrb[0].mxu0
        %1543 = vmatprep.mubr.f32.mxu0 0.0
        %1544 = vmatmul.mubr.f32.gmra.mrb[0].mxu0 %v1405
        %v1545 = vpop.f32.mrb[0].mxu0
        %v1546 = vadd.f32 0.0, %v1545
        %v1547 = vpop.f32.mrb[0].mxu0
        %1548 = vmatprep.mubr.f32.mxu0 0.0
        %1549 = vmatmul.mubr.f32.gmra.mrb[0].mxu0 %v1408
        %v1550 = vpop.f32.mrb[0].mxu0
        %v1551 = vadd.f32 0.0, %v1550
        %v1552 = vpop.f32.mrb[0].mxu0
        %1553 = vmatprep.mubr.f32.mxu0 0.0
        %1554 = vmatmul.mubr.f32.gmra.mrb[0].mxu0 %v1411
        %v1555 = vpop.f32.mrb[0].mxu0
        %v1556 = vadd.f32 0.0, %v1555
        %v1557 = vpop.f32.mrb[0].mxu0
        %1558 = vmatprep.mubr.f32.mxu0 0.0
        %1559 = vmatmul.mubr.f32.gmra.mrb[0].mxu0 %v1414
        %v1560 = vpop.f32.mrb[0].mxu0
        %v1561 = vadd.f32 0.0, %v1560
        %v1562 = vpop.f32.mrb[0].mxu0
        %1563 = vdwg.mxu0
        %v1564 = vadd.f32 %v1334, %v1486
        %v1565 = vadd.f32 %v1335, %v1491
        %v1566 = vadd.f32 %v1336, %v1496
        %v1567 = vadd.f32 %v1337, %v1501
        %v1568 = vadd.f32 %v1338, %v1506
        %v1569 = vadd.f32 %v1339, %v1511
        %v1570 = vadd.f32 %v1340, %v1516
        %v1571 = vadd.f32 %v1341, %v1521
        %v1572 = vadd.f32 %v1342, %v1526
        %v1573 = vadd.f32 %v1343, %v1531
        %v1574 = vadd.f32 %v1344, %v1536
        %v1575 = vadd.f32 %v1345, %v1541
        %v1576 = vadd.f32 %v1346, %v1546
        %v1577 = vadd.f32 %v1347, %v1551
        %v1578 = vadd.f32 %v1348, %v1556
        %v1579 = vadd.f32 %v1349, %v1561
        %s1580 = sadd.s32 %s225, 2
        %s1581 = smul.u32 %s1580, 24
        %s1582 = scalar_lea.vmem %s222, %s1581
        %v1583 = vld [vmem:[%s1582] sm:$0xff]
        %v1584 = vld [vmem:[%s1582 + $0x8] sm:$0xff]
        %v1585 = vld [vmem:[%s1582 + $0x18] sm:$0xff]
        %v1586 = vld [vmem:[%s1582 + $0x20] sm:$0xff]
        %v1587 = vld [vmem:[%s1582 + $0x30] sm:$0xff]
        %v1588 = vld [vmem:[%s1582 + $0x38] sm:$0xff]
        %v1589 = vld [vmem:[%s1582 + $0x48] sm:$0xff]
        %v1590 = vld [vmem:[%s1582 + $0x50] sm:$0xff]
        %v1591 = vld [vmem:[%s1582 + $0x60] sm:$0xff]
        %v1592 = vld [vmem:[%s1582 + $0x68] sm:$0xff]
        %v1593 = vld [vmem:[%s1582 + $0x78] sm:$0xff]
        %v1594 = vld [vmem:[%s1582 + $0x80] sm:$0xff]
        %v1595 = vld [vmem:[%s1582 + $0x90] sm:$0xff]
        %v1596 = vld [vmem:[%s1582 + $0x98] sm:$0xff]
        %v1597 = vld [vmem:[%s1582 + $0xa8] sm:$0xff]
        %v1598 = vld [vmem:[%s1582 + $0xb0] sm:$0xff]
        %s1599 = scalar_lea.vmem %s1, 24
        %v1600 = vld [vmem:[%s1599] sm:$0xf]
        %v1602 = vsel %vm263, %v1583, 0
        %v1605 = vsel %vm263, %v1584, 0
        %v1608 = vsel %vm263, %v1585, 0
        %v1611 = vsel %vm263, %v1586, 0
        %v1614 = vsel %vm263, %v1587, 0
        %v1617 = vsel %vm263, %v1588, 0
        %v1620 = vsel %vm263, %v1589, 0
        %v1623 = vsel %vm263, %v1590, 0
        %v1626 = vsel %vm263, %v1591, 0
        %v1629 = vsel %vm263, %v1592, 0
        %v1632 = vsel %vm263, %v1593, 0
        %v1635 = vsel %vm263, %v1594, 0
        %v1638 = vsel %vm263, %v1595, 0
        %v1641 = vsel %vm263, %v1596, 0
        %v1644 = vsel %vm263, %v1597, 0
        %v1647 = vsel %vm263, %v1598, 0
        %v1650 = vsel %vm312, %v1600, 0
        %1652 = vmatprep.subr.mxu0 0.0
        %1653 = vmatpush1.msra.mxu0 %v1650
        %1654 = vmatprep.subr.mxu0 0.0
        %1655 = vmatpush1.msra.mxu0 0.0
        %1656 = vmatprep.subr.mxu0 0.0
        %1657 = vmatpush1.msra.mxu0 0.0
        %1658 = vmatprep.subr.mxu0 0.0
        %1659 = vmatpush1.msra.mxu0 0.0
        %1660 = vmatprep.subr.mxu0 0.0
        %1661 = vmatpush1.msra.mxu0 0.0
        %1662 = vmatprep.subr.mxu0 0.0
        %1663 = vmatpush1.msra.mxu0 0.0
        %1664 = vmatprep.subr.mxu0 0.0
        %1665 = vmatpush1.msra.mxu0 0.0
        %1666 = vmatprep.subr.mxu0 0.0
        %1667 = vmatpush1.msra.mxu0 0.0
        %1668 = vmatprep.subr.mxu0 0.0
        %1669 = vmatpush1.msra.mxu0 0.0
        %1670 = vmatprep.subr.mxu0 0.0
        %1671 = vmatpush1.msra.mxu0 0.0
        %1672 = vmatprep.subr.mxu0 0.0
        %1673 = vmatpush1.msra.mxu0 0.0
        %1674 = vmatprep.subr.mxu0 0.0
        %1675 = vmatpush1.msra.mxu0 0.0
        %1676 = vmatprep.subr.mxu0 0.0
        %1677 = vmatpush1.msra.mxu0 0.0
        %1678 = vmatprep.subr.mxu0 0.0
        %1679 = vmatpush1.msra.mxu0 0.0
        %1680 = vmatprep.subr.mxu0 0.0
        %1681 = vmatpush1.msra.mxu0 0.0
        %1682 = vmatprep.subr.mxu0 0.0
        %1683 = vmatpush1.msra.mxu0 0.0
        %1684 = vmatprep.subr.mxu0 0.0
        %1685 = vmatpush1.msra.mxu0 0.0
        %1686 = vmatprep.subr.mxu0 0.0
        %1687 = vmatpush1.msra.mxu0 0.0
        %1688 = vmatprep.subr.mxu0 0.0
        %1689 = vmatpush1.msra.mxu0 0.0
        %1690 = vmatprep.subr.mxu0 0.0
        %1691 = vmatpush1.msra.mxu0 0.0
        %1692 = vmatprep.subr.mxu0 0.0
        %1693 = vmatpush1.msra.mxu0 0.0
        %1694 = vmatprep.subr.mxu0 0.0
        %1695 = vmatpush1.msra.mxu0 0.0
        %1696 = vmatprep.subr.mxu0 0.0
        %1697 = vmatpush1.msra.mxu0 0.0
        %1698 = vmatprep.subr.mxu0 0.0
        %1699 = vmatpush1.msra.mxu0 0.0
        %1700 = vmatprep.subr.mxu0 0.0
        %1701 = vmatpush1.msra.mxu0 0.0
        %1702 = vmatprep.subr.mxu0 0.0
        %1703 = vmatpush1.msra.mxu0 0.0
        %1704 = vmatprep.subr.mxu0 0.0
        %1705 = vmatpush1.msra.mxu0 0.0
        %1706 = vmatprep.subr.mxu0 0.0
        %1707 = vmatpush1.msra.mxu0 0.0
        %1708 = vmatprep.subr.mxu0 0.0
        %1709 = vmatpush1.msra.mxu0 0.0
        %1710 = vmatprep.subr.mxu0 0.0
        %1711 = vmatpush1.msra.mxu0 0.0
        %1712 = vmatprep.subr.mxu0 0.0
        %1713 = vmatpush1.msra.mxu0 0.0
        %1714 = vmatprep.subr.mxu0 0.0
        %1715 = vmatpush1.msra.mxu0 0.0
        %1716 = vmatprep.mubr.f32.mxu0 0.0
        %1717 = vmatmul.mubr.f32.gmra.mrb[0].mxu0 %v1602
        %v1718 = vpop.f32.mrb[0].mxu0
        %v1719 = vadd.f32 0.0, %v1718
        %v1720 = vpop.f32.mrb[0].mxu0
        %1721 = vmatprep.mubr.f32.mxu0 0.0
        %1722 = vmatmul.mubr.f32.gmra.mrb[0].mxu0 %v1605
        %v1723 = vpop.f32.mrb[0].mxu0
        %v1724 = vadd.f32 0.0, %v1723
        %v1725 = vpop.f32.mrb[0].mxu0
        %1726 = vmatprep.mubr.f32.mxu0 0.0
        %1727 = vmatmul.mubr.f32.gmra.mrb[0].mxu0 %v1608
        %v1728 = vpop.f32.mrb[0].mxu0
        %v1729 = vadd.f32 0.0, %v1728
        %v1730 = vpop.f32.mrb[0].mxu0
        %1731 = vmatprep.mubr.f32.mxu0 0.0
        %1732 = vmatmul.mubr.f32.gmra.mrb[0].mxu0 %v1611
        %v1733 = vpop.f32.mrb[0].mxu0
        %v1734 = vadd.f32 0.0, %v1733
        %v1735 = vpop.f32.mrb[0].mxu0
        %1736 = vmatprep.mubr.f32.mxu0 0.0
        %1737 = vmatmul.mubr.f32.gmra.mrb[0].mxu0 %v1614
        %v1738 = vpop.f32.mrb[0].mxu0
        %v1739 = vadd.f32 0.0, %v1738
        %v1740 = vpop.f32.mrb[0].mxu0
        %1741 = vmatprep.mubr.f32.mxu0 0.0
        %1742 = vmatmul.mubr.f32.gmra.mrb[0].mxu0 %v1617
        %v1743 = vpop.f32.mrb[0].mxu0
        %v1744 = vadd.f32 0.0, %v1743
        %v1745 = vpop.f32.mrb[0].mxu0
        %1746 = vmatprep.mubr.f32.mxu0 0.0
        %1747 = vmatmul.mubr.f32.gmra.mrb[0].mxu0 %v1620
        %v1748 = vpop.f32.mrb[0].mxu0
        %v1749 = vadd.f32 0.0, %v1748
        %v1750 = vpop.f32.mrb[0].mxu0
        %1751 = vmatprep.mubr.f32.mxu0 0.0
        %1752 = vmatmul.mubr.f32.gmra.mrb[0].mxu0 %v1623
        %v1753 = vpop.f32.mrb[0].mxu0
        %v1754 = vadd.f32 0.0, %v1753
        %v1755 = vpop.f32.mrb[0].mxu0
        %1756 = vmatprep.mubr.f32.mxu0 0.0
        %1757 = vmatmul.mubr.f32.gmra.mrb[0].mxu0 %v1626
        %v1758 = vpop.f32.mrb[0].mxu0
        %v1759 = vadd.f32 0.0, %v1758
        %v1760 = vpop.f32.mrb[0].mxu0
        %1761 = vmatprep.mubr.f32.mxu0 0.0
        %1762 = vmatmul.mubr.f32.gmra.mrb[0].mxu0 %v1629
        %v1763 = vpop.f32.mrb[0].mxu0
        %v1764 = vadd.f32 0.0, %v1763
        %v1765 = vpop.f32.mrb[0].mxu0
        %1766 = vmatprep.mubr.f32.mxu0 0.0
        %1767 = vmatmul.mubr.f32.gmra.mrb[0].mxu0 %v1632
        %v1768 = vpop.f32.mrb[0].mxu0
        %v1769 = vadd.f32 0.0, %v1768
        %v1770 = vpop.f32.mrb[0].mxu0
        %1771 = vmatprep.mubr.f32.mxu0 0.0
        %1772 = vmatmul.mubr.f32.gmra.mrb[0].mxu0 %v1635
        %v1773 = vpop.f32.mrb[0].mxu0
        %v1774 = vadd.f32 0.0, %v1773
        %v1775 = vpop.f32.mrb[0].mxu0
        %1776 = vmatprep.mubr.f32.mxu0 0.0
        %1777 = vmatmul.mubr.f32.gmra.mrb[0].mxu0 %v1638
        %v1778 = vpop.f32.mrb[0].mxu0
        %v1779 = vadd.f32 0.0, %v1778
        %v1780 = vpop.f32.mrb[0].mxu0
        %1781 = vmatprep.mubr.f32.mxu0 0.0
        %1782 = vmatmul.mubr.f32.gmra.mrb[0].mxu0 %v1641
        %v1783 = vpop.f32.mrb[0].mxu0
        %v1784 = vadd.f32 0.0, %v1783
        %v1785 = vpop.f32.mrb[0].mxu0
        %1786 = vmatprep.mubr.f32.mxu0 0.0
        %1787 = vmatmul.mubr.f32.gmra.mrb[0].mxu0 %v1644
        %v1788 = vpop.f32.mrb[0].mxu0
        %v1789 = vadd.f32 0.0, %v1788
        %v1790 = vpop.f32.mrb[0].mxu0
        %1791 = vmatprep.mubr.f32.mxu0 0.0
        %1792 = vmatmul.mubr.f32.gmra.mrb[0].mxu0 %v1647
        %v1793 = vpop.f32.mrb[0].mxu0
        %v1794 = vadd.f32 0.0, %v1793
        %v1795 = vpop.f32.mrb[0].mxu0
        %1796 = vdwg.mxu0
        %v1797 = vadd.f32 %v1564, %v1719
        %v1798 = vadd.f32 %v1565, %v1724
        %v1799 = vadd.f32 %v1566, %v1729
        %v1800 = vadd.f32 %v1567, %v1734
        %v1801 = vadd.f32 %v1568, %v1739
        %v1802 = vadd.f32 %v1569, %v1744
        %v1803 = vadd.f32 %v1570, %v1749
        %v1804 = vadd.f32 %v1571, %v1754
        %v1805 = vadd.f32 %v1572, %v1759
        %v1806 = vadd.f32 %v1573, %v1764
        %v1807 = vadd.f32 %v1574, %v1769
        %v1808 = vadd.f32 %v1575, %v1774
        %v1809 = vadd.f32 %v1576, %v1779
        %v1810 = vadd.f32 %v1577, %v1784
        %v1811 = vadd.f32 %v1578, %v1789
        %v1812 = vadd.f32 %v1579, %v1794
        %v1813 = vld [vmem:[%s1582 + $0x1] sm:$0xff]
        %v1814 = vld [vmem:[%s1582 + $0x9] sm:$0xff]
        %v1815 = vld [vmem:[%s1582 + $0x19] sm:$0xff]
        %v1816 = vld [vmem:[%s1582 + $0x21] sm:$0xff]
        %v1817 = vld [vmem:[%s1582 + $0x31] sm:$0xff]
        %v1818 = vld [vmem:[%s1582 + $0x39] sm:$0xff]
        %v1819 = vld [vmem:[%s1582 + $0x49] sm:$0xff]
        %v1820 = vld [vmem:[%s1582 + $0x51] sm:$0xff]
        %v1821 = vld [vmem:[%s1582 + $0x61] sm:$0xff]
        %v1822 = vld [vmem:[%s1582 + $0x69] sm:$0xff]
        %v1823 = vld [vmem:[%s1582 + $0x79] sm:$0xff]
        %v1824 = vld [vmem:[%s1582 + $0x81] sm:$0xff]
        %v1825 = vld [vmem:[%s1582 + $0x91] sm:$0xff]
        %v1826 = vld [vmem:[%s1582 + $0x99] sm:$0xff]
        %v1827 = vld [vmem:[%s1582 + $0xa9] sm:$0xff]
        %v1828 = vld [vmem:[%s1582 + $0xb1] sm:$0xff]
        %s1829 = scalar_lea.vmem %s1, 28
        %v1830 = vld [vmem:[%s1829] sm:$0xf]
        %v1832 = vsel %vm263, %v1813, 0
        %v1835 = vsel %vm263, %v1814, 0
        %v1838 = vsel %vm263, %v1815, 0
        %v1841 = vsel %vm263, %v1816, 0
        %v1844 = vsel %vm263, %v1817, 0
        %v1847 = vsel %vm263, %v1818, 0
        %v1850 = vsel %vm263, %v1819, 0
        %v1853 = vsel %vm263, %v1820, 0
        %v1856 = vsel %vm263, %v1821, 0
        %v1859 = vsel %vm263, %v1822, 0
        %v1862 = vsel %vm263, %v1823, 0
        %v1865 = vsel %vm263, %v1824, 0
        %v1868 = vsel %vm263, %v1825, 0
        %v1871 = vsel %vm263, %v1826, 0
        %v1874 = vsel %vm263, %v1827, 0
        %v1877 = vsel %vm263, %v1828, 0
        %v1880 = vsel %vm312, %v1830, 0
        %1882 = vmatprep.subr.mxu0 0.0
        %1883 = vmatpush1.msra.mxu0 %v1880
        %1884 = vmatprep.subr.mxu0 0.0
        %1885 = vmatpush1.msra.mxu0 0.0
        %1886 = vmatprep.subr.mxu0 0.0
        %1887 = vmatpush1.msra.mxu0 0.0
        %1888 = vmatprep.subr.mxu0 0.0
        %1889 = vmatpush1.msra.mxu0 0.0
        %1890 = vmatprep.subr.mxu0 0.0
        %1891 = vmatpush1.msra.mxu0 0.0
        %1892 = vmatprep.subr.mxu0 0.0
        %1893 = vmatpush1.msra.mxu0 0.0
        %1894 = vmatprep.subr.mxu0 0.0
        %1895 = vmatpush1.msra.mxu0 0.0
        %1896 = vmatprep.subr.mxu0 0.0
        %1897 = vmatpush1.msra.mxu0 0.0
        %1898 = vmatprep.subr.mxu0 0.0
        %1899 = vmatpush1.msra.mxu0 0.0
        %1900 = vmatprep.subr.mxu0 0.0
        %1901 = vmatpush1.msra.mxu0 0.0
        %1902 = vmatprep.subr.mxu0 0.0
        %1903 = vmatpush1.msra.mxu0 0.0
        %1904 = vmatprep.subr.mxu0 0.0
        %1905 = vmatpush1.msra.mxu0 0.0
        %1906 = vmatprep.subr.mxu0 0.0
        %1907 = vmatpush1.msra.mxu0 0.0
        %1908 = vmatprep.subr.mxu0 0.0
        %1909 = vmatpush1.msra.mxu0 0.0
        %1910 = vmatprep.subr.mxu0 0.0
        %1911 = vmatpush1.msra.mxu0 0.0
        %1912 = vmatprep.subr.mxu0 0.0
        %1913 = vmatpush1.msra.mxu0 0.0
        %1914 = vmatprep.subr.mxu0 0.0
        %1915 = vmatpush1.msra.mxu0 0.0
        %1916 = vmatprep.subr.mxu0 0.0
        %1917 = vmatpush1.msra.mxu0 0.0
        %1918 = vmatprep.subr.mxu0 0.0
        %1919 = vmatpush1.msra.mxu0 0.0
        %1920 = vmatprep.subr.mxu0 0.0
        %1921 = vmatpush1.msra.mxu0 0.0
        %1922 = vmatprep.subr.mxu0 0.0
        %1923 = vmatpush1.msra.mxu0 0.0
        %1924 = vmatprep.subr.mxu0 0.0
        %1925 = vmatpush1.msra.mxu0 0.0
        %1926 = vmatprep.subr.mxu0 0.0
        %1927 = vmatpush1.msra.mxu0 0.0
        %1928 = vmatprep.subr.mxu0 0.0
        %1929 = vmatpush1.msra.mxu0 0.0
        %1930 = vmatprep.subr.mxu0 0.0
        %1931 = vmatpush1.msra.mxu0 0.0
        %1932 = vmatprep.subr.mxu0 0.0
        %1933 = vmatpush1.msra.mxu0 0.0
        %1934 = vmatprep.subr.mxu0 0.0
        %1935 = vmatpush1.msra.mxu0 0.0
        %1936 = vmatprep.subr.mxu0 0.0
        %1937 = vmatpush1.msra.mxu0 0.0
        %1938 = vmatprep.subr.mxu0 0.0
        %1939 = vmatpush1.msra.mxu0 0.0
        %1940 = vmatprep.subr.mxu0 0.0
        %1941 = vmatpush1.msra.mxu0 0.0
        %1942 = vmatprep.subr.mxu0 0.0
        %1943 = vmatpush1.msra.mxu0 0.0
        %1944 = vmatprep.subr.mxu0 0.0
        %1945 = vmatpush1.msra.mxu0 0.0
        %1946 = vmatprep.mubr.f32.mxu0 0.0
        %1947 = vmatmul.mubr.f32.gmra.mrb[0].mxu0 %v1832
        %v1948 = vpop.f32.mrb[0].mxu0
        %v1949 = vadd.f32 0.0, %v1948
        %v1950 = vpop.f32.mrb[0].mxu0
        %1951 = vmatprep.mubr.f32.mxu0 0.0
        %1952 = vmatmul.mubr.f32.gmra.mrb[0].mxu0 %v1835
        %v1953 = vpop.f32.mrb[0].mxu0
        %v1954 = vadd.f32 0.0, %v1953
        %v1955 = vpop.f32.mrb[0].mxu0
        %1956 = vmatprep.mubr.f32.mxu0 0.0
        %1957 = vmatmul.mubr.f32.gmra.mrb[0].mxu0 %v1838
        %v1958 = vpop.f32.mrb[0].mxu0
        %v1959 = vadd.f32 0.0, %v1958
        %v1960 = vpop.f32.mrb[0].mxu0
        %1961 = vmatprep.mubr.f32.mxu0 0.0
        %1962 = vmatmul.mubr.f32.gmra.mrb[0].mxu0 %v1841
        %v1963 = vpop.f32.mrb[0].mxu0
        %v1964 = vadd.f32 0.0, %v1963
        %v1965 = vpop.f32.mrb[0].mxu0
        %1966 = vmatprep.mubr.f32.mxu0 0.0
        %1967 = vmatmul.mubr.f32.gmra.mrb[0].mxu0 %v1844
        %v1968 = vpop.f32.mrb[0].mxu0
        %v1969 = vadd.f32 0.0, %v1968
        %v1970 = vpop.f32.mrb[0].mxu0
        %1971 = vmatprep.mubr.f32.mxu0 0.0
        %1972 = vmatmul.mubr.f32.gmra.mrb[0].mxu0 %v1847
        %v1973 = vpop.f32.mrb[0].mxu0
        %v1974 = vadd.f32 0.0, %v1973
        %v1975 = vpop.f32.mrb[0].mxu0
        %1976 = vmatprep.mubr.f32.mxu0 0.0
        %1977 = vmatmul.mubr.f32.gmra.mrb[0].mxu0 %v1850
        %v1978 = vpop.f32.mrb[0].mxu0
        %v1979 = vadd.f32 0.0, %v1978
        %v1980 = vpop.f32.mrb[0].mxu0
        %1981 = vmatprep.mubr.f32.mxu0 0.0
        %1982 = vmatmul.mubr.f32.gmra.mrb[0].mxu0 %v1853
        %v1983 = vpop.f32.mrb[0].mxu0
        %v1984 = vadd.f32 0.0, %v1983
        %v1985 = vpop.f32.mrb[0].mxu0
        %1986 = vmatprep.mubr.f32.mxu0 0.0
        %1987 = vmatmul.mubr.f32.gmra.mrb[0].mxu0 %v1856
        %v1988 = vpop.f32.mrb[0].mxu0
        %v1989 = vadd.f32 0.0, %v1988
        %v1990 = vpop.f32.mrb[0].mxu0
        %1991 = vmatprep.mubr.f32.mxu0 0.0
        %1992 = vmatmul.mubr.f32.gmra.mrb[0].mxu0 %v1859
        %v1993 = vpop.f32.mrb[0].mxu0
        %v1994 = vadd.f32 0.0, %v1993
        %v1995 = vpop.f32.mrb[0].mxu0
        %1996 = vmatprep.mubr.f32.mxu0 0.0
        %1997 = vmatmul.mubr.f32.gmra.mrb[0].mxu0 %v1862
        %v1998 = vpop.f32.mrb[0].mxu0
        %v1999 = vadd.f32 0.0, %v1998
        %v2000 = vpop.f32.mrb[0].mxu0
        %2001 = vmatprep.mubr.f32.mxu0 0.0
        %2002 = vmatmul.mubr.f32.gmra.mrb[0].mxu0 %v1865
        %v2003 = vpop.f32.mrb[0].mxu0
        %v2004 = vadd.f32 0.0, %v2003
        %v2005 = vpop.f32.mrb[0].mxu0
        %2006 = vmatprep.mubr.f32.mxu0 0.0
        %2007 = vmatmul.mubr.f32.gmra.mrb[0].mxu0 %v1868
        %v2008 = vpop.f32.mrb[0].mxu0
        %v2009 = vadd.f32 0.0, %v2008
        %v2010 = vpop.f32.mrb[0].mxu0
        %2011 = vmatprep.mubr.f32.mxu0 0.0
        %2012 = vmatmul.mubr.f32.gmra.mrb[0].mxu0 %v1871
        %v2013 = vpop.f32.mrb[0].mxu0
        %v2014 = vadd.f32 0.0, %v2013
        %v2015 = vpop.f32.mrb[0].mxu0
        %2016 = vmatprep.mubr.f32.mxu0 0.0
        %2017 = vmatmul.mubr.f32.gmra.mrb[0].mxu0 %v1874
        %v2018 = vpop.f32.mrb[0].mxu0
        %v2019 = vadd.f32 0.0, %v2018
        %v2020 = vpop.f32.mrb[0].mxu0
        %2021 = vmatprep.mubr.f32.mxu0 0.0
        %2022 = vmatmul.mubr.f32.gmra.mrb[0].mxu0 %v1877
        %v2023 = vpop.f32.mrb[0].mxu0
        %v2024 = vadd.f32 0.0, %v2023
        %v2025 = vpop.f32.mrb[0].mxu0
        %2026 = vdwg.mxu0
        %v2027 = vadd.f32 %v1797, %v1949
        %v2028 = vadd.f32 %v1798, %v1954
        %v2029 = vadd.f32 %v1799, %v1959
        %v2030 = vadd.f32 %v1800, %v1964
        %v2031 = vadd.f32 %v1801, %v1969
        %v2032 = vadd.f32 %v1802, %v1974
        %v2033 = vadd.f32 %v1803, %v1979
        %v2034 = vadd.f32 %v1804, %v1984
        %v2035 = vadd.f32 %v1805, %v1989
        %v2036 = vadd.f32 %v1806, %v1994
        %v2037 = vadd.f32 %v1807, %v1999
        %v2038 = vadd.f32 %v1808, %v2004
        %v2039 = vadd.f32 %v1809, %v2009
        %v2040 = vadd.f32 %v1810, %v2014
        %v2041 = vadd.f32 %v1811, %v2019
        %v2042 = vadd.f32 %v1812, %v2024
        %v2043 = vld [vmem:[%s1582 + $0x2] sm:$0xff]
        %v2044 = vld [vmem:[%s1582 + $0xa] sm:$0xff]
        %v2045 = vld [vmem:[%s1582 + $0x1a] sm:$0xff]
        %v2046 = vld [vmem:[%s1582 + $0x22] sm:$0xff]
        %v2047 = vld [vmem:[%s1582 + $0x32] sm:$0xff]
        %v2048 = vld [vmem:[%s1582 + $0x3a] sm:$0xff]
        %v2049 = vld [vmem:[%s1582 + $0x4a] sm:$0xff]
        %v2050 = vld [vmem:[%s1582 + $0x52] sm:$0xff]
        %v2051 = vld [vmem:[%s1582 + $0x62] sm:$0xff]
        %v2052 = vld [vmem:[%s1582 + $0x6a] sm:$0xff]
        %v2053 = vld [vmem:[%s1582 + $0x7a] sm:$0xff]
        %v2054 = vld [vmem:[%s1582 + $0x82] sm:$0xff]
        %v2055 = vld [vmem:[%s1582 + $0x92] sm:$0xff]
        %v2056 = vld [vmem:[%s1582 + $0x9a] sm:$0xff]
        %v2057 = vld [vmem:[%s1582 + $0xaa] sm:$0xff]
        %v2058 = vld [vmem:[%s1582 + $0xb2] sm:$0xff]
        %s2059 = scalar_lea.vmem %s1, 32
        %v2060 = vld [vmem:[%s2059] sm:$0xf]
        %v2062 = vsel %vm263, %v2043, 0
        %v2065 = vsel %vm263, %v2044, 0
        %v2068 = vsel %vm263, %v2045, 0
        %v2071 = vsel %vm263, %v2046, 0
        %v2074 = vsel %vm263, %v2047, 0
        %v2077 = vsel %vm263, %v2048, 0
        %v2080 = vsel %vm263, %v2049, 0
        %v2083 = vsel %vm263, %v2050, 0
        %v2086 = vsel %vm263, %v2051, 0
        %v2089 = vsel %vm263, %v2052, 0
        %v2092 = vsel %vm263, %v2053, 0
        %v2095 = vsel %vm263, %v2054, 0
        %v2098 = vsel %vm263, %v2055, 0
        %v2101 = vsel %vm263, %v2056, 0
        %v2104 = vsel %vm263, %v2057, 0
        %v2107 = vsel %vm263, %v2058, 0
        %v2110 = vsel %vm312, %v2060, 0
        %2112 = vmatprep.subr.mxu0 0.0
        %2113 = vmatpush1.msra.mxu0 %v2110
        %2114 = vmatprep.subr.mxu0 0.0
        %2115 = vmatpush1.msra.mxu0 0.0
        %2116 = vmatprep.subr.mxu0 0.0
        %2117 = vmatpush1.msra.mxu0 0.0
        %2118 = vmatprep.subr.mxu0 0.0
        %2119 = vmatpush1.msra.mxu0 0.0
        %2120 = vmatprep.subr.mxu0 0.0
        %2121 = vmatpush1.msra.mxu0 0.0
        %2122 = vmatprep.subr.mxu0 0.0
        %2123 = vmatpush1.msra.mxu0 0.0
        %2124 = vmatprep.subr.mxu0 0.0
        %2125 = vmatpush1.msra.mxu0 0.0
        %2126 = vmatprep.subr.mxu0 0.0
        %2127 = vmatpush1.msra.mxu0 0.0
        %2128 = vmatprep.subr.mxu0 0.0
        %2129 = vmatpush1.msra.mxu0 0.0
        %2130 = vmatprep.subr.mxu0 0.0
        %2131 = vmatpush1.msra.mxu0 0.0
        %2132 = vmatprep.subr.mxu0 0.0
        %2133 = vmatpush1.msra.mxu0 0.0
        %2134 = vmatprep.subr.mxu0 0.0
        %2135 = vmatpush1.msra.mxu0 0.0
        %2136 = vmatprep.subr.mxu0 0.0
        %2137 = vmatpush1.msra.mxu0 0.0
        %2138 = vmatprep.subr.mxu0 0.0
        %2139 = vmatpush1.msra.mxu0 0.0
        %2140 = vmatprep.subr.mxu0 0.0
        %2141 = vmatpush1.msra.mxu0 0.0
        %2142 = vmatprep.subr.mxu0 0.0
        %2143 = vmatpush1.msra.mxu0 0.0
        %2144 = vmatprep.subr.mxu0 0.0
        %2145 = vmatpush1.msra.mxu0 0.0
        %2146 = vmatprep.subr.mxu0 0.0
        %2147 = vmatpush1.msra.mxu0 0.0
        %2148 = vmatprep.subr.mxu0 0.0
        %2149 = vmatpush1.msra.mxu0 0.0
        %2150 = vmatprep.subr.mxu0 0.0
        %2151 = vmatpush1.msra.mxu0 0.0
        %2152 = vmatprep.subr.mxu0 0.0
        %2153 = vmatpush1.msra.mxu0 0.0
        %2154 = vmatprep.subr.mxu0 0.0
        %2155 = vmatpush1.msra.mxu0 0.0
        %2156 = vmatprep.subr.mxu0 0.0
        %2157 = vmatpush1.msra.mxu0 0.0
        %2158 = vmatprep.subr.mxu0 0.0
        %2159 = vmatpush1.msra.mxu0 0.0
        %2160 = vmatprep.subr.mxu0 0.0
        %2161 = vmatpush1.msra.mxu0 0.0
        %2162 = vmatprep.subr.mxu0 0.0
        %2163 = vmatpush1.msra.mxu0 0.0
        %2164 = vmatprep.subr.mxu0 0.0
        %2165 = vmatpush1.msra.mxu0 0.0
        %2166 = vmatprep.subr.mxu0 0.0
        %2167 = vmatpush1.msra.mxu0 0.0
        %2168 = vmatprep.subr.mxu0 0.0
        %2169 = vmatpush1.msra.mxu0 0.0
        %2170 = vmatprep.subr.mxu0 0.0
        %2171 = vmatpush1.msra.mxu0 0.0
        %2172 = vmatprep.subr.mxu0 0.0
        %2173 = vmatpush1.msra.mxu0 0.0
        %2174 = vmatprep.subr.mxu0 0.0
        %2175 = vmatpush1.msra.mxu0 0.0
        %2176 = vmatprep.mubr.f32.mxu0 0.0
        %2177 = vmatmul.mubr.f32.gmra.mrb[0].mxu0 %v2062
        %v2178 = vpop.f32.mrb[0].mxu0
        %v2179 = vadd.f32 0.0, %v2178
        %v2180 = vpop.f32.mrb[0].mxu0
        %2181 = vmatprep.mubr.f32.mxu0 0.0
        %2182 = vmatmul.mubr.f32.gmra.mrb[0].mxu0 %v2065
        %v2183 = vpop.f32.mrb[0].mxu0
        %v2184 = vadd.f32 0.0, %v2183
        %v2185 = vpop.f32.mrb[0].mxu0
        %2186 = vmatprep.mubr.f32.mxu0 0.0
        %2187 = vmatmul.mubr.f32.gmra.mrb[0].mxu0 %v2068
        %v2188 = vpop.f32.mrb[0].mxu0
        %v2189 = vadd.f32 0.0, %v2188
        %v2190 = vpop.f32.mrb[0].mxu0
        %2191 = vmatprep.mubr.f32.mxu0 0.0
        %2192 = vmatmul.mubr.f32.gmra.mrb[0].mxu0 %v2071
        %v2193 = vpop.f32.mrb[0].mxu0
        %v2194 = vadd.f32 0.0, %v2193
        %v2195 = vpop.f32.mrb[0].mxu0
        %2196 = vmatprep.mubr.f32.mxu0 0.0
        %2197 = vmatmul.mubr.f32.gmra.mrb[0].mxu0 %v2074
        %v2198 = vpop.f32.mrb[0].mxu0
        %v2199 = vadd.f32 0.0, %v2198
        %v2200 = vpop.f32.mrb[0].mxu0
        %2201 = vmatprep.mubr.f32.mxu0 0.0
        %2202 = vmatmul.mubr.f32.gmra.mrb[0].mxu0 %v2077
        %v2203 = vpop.f32.mrb[0].mxu0
        %v2204 = vadd.f32 0.0, %v2203
        %v2205 = vpop.f32.mrb[0].mxu0
        %2206 = vmatprep.mubr.f32.mxu0 0.0
        %2207 = vmatmul.mubr.f32.gmra.mrb[0].mxu0 %v2080
        %v2208 = vpop.f32.mrb[0].mxu0
        %v2209 = vadd.f32 0.0, %v2208
        %v2210 = vpop.f32.mrb[0].mxu0
        %2211 = vmatprep.mubr.f32.mxu0 0.0
        %2212 = vmatmul.mubr.f32.gmra.mrb[0].mxu0 %v2083
        %v2213 = vpop.f32.mrb[0].mxu0
        %v2214 = vadd.f32 0.0, %v2213
        %v2215 = vpop.f32.mrb[0].mxu0
        %2216 = vmatprep.mubr.f32.mxu0 0.0
        %2217 = vmatmul.mubr.f32.gmra.mrb[0].mxu0 %v2086
        %v2218 = vpop.f32.mrb[0].mxu0
        %v2219 = vadd.f32 0.0, %v2218
        %v2220 = vpop.f32.mrb[0].mxu0
        %2221 = vmatprep.mubr.f32.mxu0 0.0
        %2222 = vmatmul.mubr.f32.gmra.mrb[0].mxu0 %v2089
        %v2223 = vpop.f32.mrb[0].mxu0
        %v2224 = vadd.f32 0.0, %v2223
        %v2225 = vpop.f32.mrb[0].mxu0
        %2226 = vmatprep.mubr.f32.mxu0 0.0
        %2227 = vmatmul.mubr.f32.gmra.mrb[0].mxu0 %v2092
        %v2228 = vpop.f32.mrb[0].mxu0
        %v2229 = vadd.f32 0.0, %v2228
        %v2230 = vpop.f32.mrb[0].mxu0
        %2231 = vmatprep.mubr.f32.mxu0 0.0
        %2232 = vmatmul.mubr.f32.gmra.mrb[0].mxu0 %v2095
        %v2233 = vpop.f32.mrb[0].mxu0
        %v2234 = vadd.f32 0.0, %v2233
        %v2235 = vpop.f32.mrb[0].mxu0
        %2236 = vmatprep.mubr.f32.mxu0 0.0
        %2237 = vmatmul.mubr.f32.gmra.mrb[0].mxu0 %v2098
        %v2238 = vpop.f32.mrb[0].mxu0
        %v2239 = vadd.f32 0.0, %v2238
        %v2240 = vpop.f32.mrb[0].mxu0
        %2241 = vmatprep.mubr.f32.mxu0 0.0
        %2242 = vmatmul.mubr.f32.gmra.mrb[0].mxu0 %v2101
        %v2243 = vpop.f32.mrb[0].mxu0
        %v2244 = vadd.f32 0.0, %v2243
        %v2245 = vpop.f32.mrb[0].mxu0
        %2246 = vmatprep.mubr.f32.mxu0 0.0
        %2247 = vmatmul.mubr.f32.gmra.mrb[0].mxu0 %v2104
        %v2248 = vpop.f32.mrb[0].mxu0
        %v2249 = vadd.f32 0.0, %v2248
        %v2250 = vpop.f32.mrb[0].mxu0
        %2251 = vmatprep.mubr.f32.mxu0 0.0
        %2252 = vmatmul.mubr.f32.gmra.mrb[0].mxu0 %v2107
        %v2253 = vpop.f32.mrb[0].mxu0
        %v2254 = vadd.f32 0.0, %v2253
        %v2255 = vpop.f32.mrb[0].mxu0
        %2256 = vdwg.mxu0
        %v2257 = vadd.f32 %v2027, %v2179
        %v2258 = vadd.f32 %v2028, %v2184
        %v2259 = vadd.f32 %v2029, %v2189
        %v2260 = vadd.f32 %v2030, %v2194
        %v2261 = vadd.f32 %v2031, %v2199
        %v2262 = vadd.f32 %v2032, %v2204
        %v2263 = vadd.f32 %v2033, %v2209
        %v2264 = vadd.f32 %v2034, %v2214
        %v2265 = vadd.f32 %v2035, %v2219
        %v2266 = vadd.f32 %v2036, %v2224
        %v2267 = vadd.f32 %v2037, %v2229
        %v2268 = vadd.f32 %v2038, %v2234
        %v2269 = vadd.f32 %v2039, %v2239
        %v2270 = vadd.f32 %v2040, %v2244
        %v2271 = vadd.f32 %v2041, %v2249
        %v2272 = vadd.f32 %v2042, %v2254
        %v2273 = vld [vmem:[%s2] sm:$0x1]
        %v2275 = vlaneseq
        %v2276 = vshrl.u32 %v2275, 7
        %v2277 = vsub.s32 0, %v2276
        %v2278 = vrot.slane %v2273, %v2277
        %v2280 = vadd.f32 %v2257, %v2278
        %v2281 = vadd.f32 %v2258, %v2278
        %v2282 = vadd.f32 %v2259, %v2278
        %v2283 = vadd.f32 %v2260, %v2278
        %v2284 = vadd.f32 %v2261, %v2278
        %v2285 = vadd.f32 %v2262, %v2278
        %v2286 = vadd.f32 %v2263, %v2278
        %v2287 = vadd.f32 %v2264, %v2278
        %v2288 = vadd.f32 %v2265, %v2278
        %v2289 = vadd.f32 %v2266, %v2278
        %v2290 = vadd.f32 %v2267, %v2278
        %v2291 = vadd.f32 %v2268, %v2278
        %v2292 = vadd.f32 %v2269, %v2278
        %v2293 = vadd.f32 %v2270, %v2278
        %v2294 = vadd.f32 %v2271, %v2278
        %v2295 = vadd.f32 %v2272, %v2278
        %2296 = vst [vmem:[%s210] sm:$0xff] %v2280
        %2297 = vst [vmem:[%s210 + $0x8] sm:$0xff] %v2281
        %2298 = vst [vmem:[%s210 + $0x10] sm:$0xff] %v2282
        %2299 = vst [vmem:[%s210 + $0x18] sm:$0xff] %v2283
        %2300 = vst [vmem:[%s210 + $0x20] sm:$0xff] %v2284
        %2301 = vst [vmem:[%s210 + $0x28] sm:$0xff] %v2285
        %2302 = vst [vmem:[%s210 + $0x30] sm:$0xff] %v2286
        %2303 = vst [vmem:[%s210 + $0x38] sm:$0xff] %v2287
        %2304 = vst [vmem:[%s210 + $0x40] sm:$0xff] %v2288
        %2305 = vst [vmem:[%s210 + $0x48] sm:$0xff] %v2289
        %2306 = vst [vmem:[%s210 + $0x50] sm:$0xff] %v2290
        %2307 = vst [vmem:[%s210 + $0x58] sm:$0xff] %v2291
        %2308 = vst [vmem:[%s210 + $0x60] sm:$0xff] %v2292
        %2309 = vst [vmem:[%s210 + $0x68] sm:$0xff] %v2293
        %2310 = vst [vmem:[%s210 + $0x70] sm:$0xff] %v2294
        %2311 = vst [vmem:[%s210 + $0x78] sm:$0xff] %v2295
        %v2312 = vmax.f32 %v2280, 0.0
        %v2313 = vmax.f32 %v2281, 0.0
        %v2314 = vmax.f32 %v2282, 0.0
        %v2315 = vmax.f32 %v2283, 0.0
        %v2316 = vmax.f32 %v2284, 0.0
        %v2317 = vmax.f32 %v2285, 0.0
        %v2318 = vmax.f32 %v2286, 0.0
        %v2319 = vmax.f32 %v2287, 0.0
        %v2320 = vmax.f32 %v2288, 0.0
        %v2321 = vmax.f32 %v2289, 0.0
        %v2322 = vmax.f32 %v2290, 0.0
        %v2323 = vmax.f32 %v2291, 0.0
        %v2324 = vmax.f32 %v2292, 0.0
        %v2325 = vmax.f32 %v2293, 0.0
        %v2326 = vmax.f32 %v2294, 0.0
        %v2327 = vmax.f32 %v2295, 0.0
        %2328 = vst [vmem:[%s217] sm:$0xff] %v2312
        %2329 = vst [vmem:[%s217 + $0x8] sm:$0xff] %v2313
        %2330 = vst [vmem:[%s217 + $0x10] sm:$0xff] %v2314
        %2331 = vst [vmem:[%s217 + $0x18] sm:$0xff] %v2315
        %2332 = vst [vmem:[%s217 + $0x20] sm:$0xff] %v2316
        %2333 = vst [vmem:[%s217 + $0x28] sm:$0xff] %v2317
        %2334 = vst [vmem:[%s217 + $0x30] sm:$0xff] %v2318
        %2335 = vst [vmem:[%s217 + $0x38] sm:$0xff] %v2319
        %2336 = vst [vmem:[%s217 + $0x40] sm:$0xff] %v2320
        %2337 = vst [vmem:[%s217 + $0x48] sm:$0xff] %v2321
        %2338 = vst [vmem:[%s217 + $0x50] sm:$0xff] %v2322
        %2339 = vst [vmem:[%s217 + $0x58] sm:$0xff] %v2323
        %2340 = vst [vmem:[%s217 + $0x60] sm:$0xff] %v2324
        %2341 = vst [vmem:[%s217 + $0x68] sm:$0xff] %v2325
        %2342 = vst [vmem:[%s217 + $0x70] sm:$0xff] %v2326
        %2343 = vst [vmem:[%s217 + $0x78] sm:$0xff] %v2327
        %s2344 = sand.u32 %s112, 1
        %s2345 = scalar_lea.sflag [#allocation3], %s2344
        %s2346 = sand.u32 %s112, 1
        %s2347 = smul.addr %s2346, 128
        %s2348 = scalar_lea.vmem [#allocation2], %s2347
        %s2349 = sand.u32 %s140, 1
        %s2350 = scalar_lea.sflag [#allocation5], %s2349
        %s2351 = sand.u32 %s140, 1
        %s2352 = smul.addr %s2351, 128
        %s2353 = scalar_lea.vmem [#allocation4], %s2352
        // Predicated region
        $region33: #{tpu_custom_call.1} parent=31 // pred_check
          %p2354 = pneg %p122
        $region34: #{tpu_custom_call.1} parent=31 // pred_check_branch
          %2356 = sbr.rel (%p2354) target = $region36
        $region35: #{tpu_custom_call.1} parent=31 // pred_region
          %s2357 = smul.u32 8, %s27
          %s2359 = ssub.s32 2048, 2048
          %2360 = vsyncadd %s2345, %s2359
          %s2361 = smul.addr %s2357, 2
          %s2362 = smul.addr %s26, 32
          %s2363 = sadd.s32 %s2361, %s2362
          %s2364 = smul.addr %s2363, 128
          %s2365 = scalar_lea.hbm %s3, %s2364
          %s2366 = sshll.u32 %s2348, 4
          %s2367 = int_to_ptr.vmem [resolvable:$true] %s2366
          %2372 = dma.vmem_to_hbm [thread:$0]  %s2367, 2048, %s2365, %s2345, 128, 128, 8
        $region36: #{tpu_custom_call.1} parent=31 // pred_fallthru
          _
        // Predicated region
        $region37: #{tpu_custom_call.1} parent=31 // pred_check
          %p2373 = pneg %p150
        $region38: #{tpu_custom_call.1} parent=31 // pred_check_branch
          %2375 = sbr.rel (%p2373) target = $region40
        $region39: #{tpu_custom_call.1} parent=31 // pred_region
          %s2376 = smul.u32 8, %s27
          %s2378 = ssub.s32 2048, 2048
          %2379 = vsyncadd %s2350, %s2378
          %s2380 = smul.addr %s2376, 2
          %s2381 = smul.addr %s26, 32
          %s2382 = sadd.s32 %s2380, %s2381
          %s2383 = smul.addr %s2382, 128
          %s2384 = scalar_lea.hbm %s4, %s2383
          %s2385 = sshll.u32 %s2353, 4
          %s2386 = int_to_ptr.vmem [resolvable:$true] %s2385
          %2391 = dma.vmem_to_hbm [thread:$0]  %s2386, 2048, %s2384, %s2350, 128, 128, 8
        $region40: #{tpu_custom_call.1} parent=31 // pred_fallthru
          _
      $region32: #{tpu_custom_call.1} parent=5 // pred_fallthru
        _
      %p2392 = scmp.le.s32.totalorder 2, %s17
      // Predicated region
      $region41: #{tpu_custom_call.1} parent=5 // pred_check
        %p2393 = pneg %p2392
      $region42: #{tpu_custom_call.1} parent=5 // pred_check_branch
        %2395 = sbr.rel (%p2393) target = $region44
      $region43: #{tpu_custom_call.1} parent=5 // pred_region
        %s2396 = ssub.s32 %s17, 2
        // Predicated region
        $region45: #{tpu_custom_call.1} parent=43 // pred_check
          %p2397 = pneg %p128
        $region46: #{tpu_custom_call.1} parent=43 // pred_check_branch
          %2399 = sbr.rel (%p2397) target = $region48
        $region47: #{tpu_custom_call.1} parent=43 // pred_region
          %s2400 = sand.u32 %s113, 1
          %s2401 = scalar_lea.sflag [#allocation3], %s2400
          %s2402 = sand.u32 %s113, 1
          %s2403 = smul.addr %s2402, 128
          %s2404 = scalar_lea.vmem [#allocation2], %s2403
          %2405 = dma.done %s2401, 2048
        $region48: #{tpu_custom_call.1} parent=43 // pred_fallthru
          _
        // Predicated region
        $region49: #{tpu_custom_call.1} parent=43 // pred_check
          %p2406 = pneg %p156
        $region50: #{tpu_custom_call.1} parent=43 // pred_check_branch
          %2408 = sbr.rel (%p2406) target = $region52
        $region51: #{tpu_custom_call.1} parent=43 // pred_region
          %s2409 = sand.u32 %s141, 1
          %s2410 = scalar_lea.sflag [#allocation5], %s2409
          %s2411 = sand.u32 %s141, 1
          %s2412 = smul.addr %s2411, 128
          %s2413 = scalar_lea.vmem [#allocation4], %s2412
          %2414 = dma.done %s2410, 2048
        $region52: #{tpu_custom_call.1} parent=43 // pred_fallthru
          _
      $region44: #{tpu_custom_call.1} parent=5 // pred_fallthru
        _
    $region6: #{tpu_custom_call.1} parent=1 // loop_footer
      %s21 = sadd.s32 1, %s17
    $region7: #{tpu_custom_call.1} parent=1 // loop_footer_branch
      %16 = sbr.rel target = $region3
    $region8: #{tpu_custom_call.1} parent=1 // loop_exit
      _
    %2415 = vsyncpa [#allocation3], 1
    %s2416 = scalar_lea.sflag [#allocation3], 1
    %2417 = vsyncpa %s2416, 1
    %2418 = vsyncpa [#allocation5], 1
    %s2419 = scalar_lea.sflag [#allocation5], 1
    %2420 = vsyncpa %s2419, 1

</llo_original>
